<compile_context>
chip_gen: v7x
topology: tpu7x:2x2x1
jax: 0.10.0
libtpu: 0.0.40
codegen_flags: <defaults>
</compile_context>

<pallas_src>
import jax
import jax.numpy as jnp
from jax.experimental import pallas as pl
from jax.experimental.pallas import tpu as pltpu

EPS = 1e-5  # nn.LayerNorm default eps


def _layernorm(v, gamma, beta):
    mu = jnp.mean(v, axis=-1, keepdims=True)
    var = jnp.mean(jnp.square(v - mu), axis=-1, keepdims=True)
    return (v - mu) * jax.lax.rsqrt(var + EPS) * gamma + beta


# ---------------------------------------------------------------------------
# Kernels
# ---------------------------------------------------------------------------

def metaformer_resident_kernel(x_ref,                 # (TM, D) input rows
                               g1_ref, b1_ref,        # (1, D)  LayerNorm1
                               g2_ref, b2_ref,        # (1, D)  LayerNorm2
                               w1_ref,                # (D, H)  fc1 weight (bf16, resident)
                               w2_ref,                # (H, D)  s * fc2 weight (bf16, resident)
                               bias2_ref,             # (1, D)  b * sum(W2, axis=0)
                               o_ref):                # (TM, D) output rows
    x = x_ref[...].astype(jnp.float32)
    y1 = x + _layernorm(x, g1_ref[...], b1_ref[...])          # token_mixer = Identity
    n2 = _layernorm(y1, g2_ref[...], b2_ref[...]).astype(w1_ref.dtype)
    h = jnp.dot(n2, w1_ref[...], preferred_element_type=jnp.float32)
    r = jnp.maximum(h, 0.0)
    a = (r * r).astype(w2_ref.dtype)                          # StarReLU scale/bias folded into W2/bias2
    o = jnp.dot(a, w2_ref[...], preferred_element_type=jnp.float32)
    o_ref[...] = (y1 + o + bias2_ref[...]).astype(o_ref.dtype)


def metaformer_stream_kernel(x_ref,                   # (TM, D) input rows
                             g1_ref, b1_ref,          # (1, D)
                             g2_ref, b2_ref,          # (1, D)
                             w1_ref,                  # (D, TH) fc1 weight chunk
                             w2_ref,                  # (TH, D) s * fc2 weight chunk
                             bias2_ref,               # (1, D)
                             o_ref,                   # (TM, D)
                             y1_s,                    # (TM, D) f32 scratch: x + LN1(x)
                             n2_s,                    # (TM, D) bf16 scratch: LN2(y1)
                             acc_s):                  # (TM, D) f32 scratch: fc2 accumulator
    h_idx = pl.program_id(1)

    # First H chunk for this row tile: compute residual branch + LN2 once.
    @pl.when(h_idx == 0)
    def _():
        x = x_ref[...].astype(jnp.float32)
        y1 = x + _layernorm(x, g1_ref[...], b1_ref[...])
        y1_s[...] = y1
        n2_s[...] = _layernorm(y1, g2_ref[...], b2_ref[...]).astype(n2_s.dtype)

    # fc1 chunk (bf16 x bf16 -> f32), StarReLU core, fc2 chunk partial in f32.
    h = jnp.dot(n2_s[...], w1_ref[...], preferred_element_type=jnp.float32)
    r = jnp.maximum(h, 0.0)
    a = (r * r).astype(w2_ref.dtype)
    part = jnp.dot(a, w2_ref[...], preferred_element_type=jnp.float32)

    # First chunk writes directly (no zero-fill pass); later chunks accumulate.
    @pl.when(h_idx == 0)
    def _():
        acc_s[...] = part

    @pl.when(h_idx > 0)
    def _():
        acc_s[...] += part

    # Last H chunk: add residual + folded StarReLU bias, write the output tile.
    @pl.when(h_idx == pl.num_programs(1) - 1)
    def _():
        o_ref[...] = (y1_s[...] + acc_s[...] + bias2_ref[...]).astype(o_ref.dtype)


# ---------------------------------------------------------------------------
# Wrapper
# ---------------------------------------------------------------------------

def _vmem_capacity_bytes():
    """Physical VMEM per core; conservative 64 MiB fallback (v7x-safe)."""
    try:
        return int(pltpu.get_tpu_info().vmem_capacity_bytes)
    except Exception:
        return 64 * 1024 * 1024


def _pick_tile_m(rows, want):
    """Prefer a row-tile that divides `rows` (avoids a wrapper-side pad copy)."""
    if rows < 16:
        return rows, rows                       # one full-extent tile
    want = max(8, min(want, rows))
    if rows % want == 0:
        return want, rows
    start = (want // 8) * 8
    for cand in range(start, 7, -8):            # multiples of 8 (sublane alignment)
        if rows % cand == 0:
            return cand, rows
    rows_p = pl.cdiv(rows, want) * want         # last resort: pad
    return want, rows_p


def metaformer_block(x, params, *, tile_m=None, tile_h=None,
                     matmul_dtype=jnp.bfloat16, force_stream=False):
    """x: (B, N, D). params: dict of weights. Returns (B, N, D)."""
    B, N, D = x.shape
    H = params["w1"].shape[1]
    rows = B * N

    vmem_cap = _vmem_capacity_bytes()
    budget = int(vmem_cap * 0.75)               # ~48 MiB on v7x, ~96 MiB on v5e/v6e

    wsize = jnp.dtype(matmul_dtype).itemsize
    xsize = jnp.dtype(x.dtype).itemsize

    # Larger row tiles on 128-MiB chips (v5e/v6e); 256 elsewhere (v7x / unknown).
    if tile_m is None:
        tile_m = 512 if vmem_cap >= 96 * 1024 * 1024 else 256
    # Make sure the parallel row axis has >= 2 tiles so both v7x TCs get work.
    if rows >= 16 and rows < 2 * tile_m:
        tile_m = max(8, (rows // 2) // 8 * 8)
    tile_m, rows_p = _pick_tile_m(rows, tile_m)

    x2d = x.reshape(rows, D)
    if rows_p != rows:
        x2d = jnp.pad(x2d, ((0, rows_p - rows), (0, 0)))

    # Fold StarReLU scalars into fc2: a@W2 with a = s*relu(h)^2 + b
    #   == relu(h)^2 @ (s*W2) + b*sum(W2, axis=0).
    s = params["star_sb"][0]
    b = params["star_sb"][1]
    w2f = params["w2"].astype(jnp.float32)
    w1 = params["w1"].astype(matmul_dtype)
    w2 = (s * w2f).astype(matmul_dtype)
    bias2 = (b * jnp.sum(w2f, axis=0, keepdims=True)).astype(jnp.float32)   # (1, D)
    # TODO(synk): on v7x, fp8(e4m3) weights would halve weight VMEM/HBM and raise MXU
    # throughput; needs numerics validation against the reference tolerance.

    ln_args = (params["g1"], params["b1"], params["g2"], params["b2"])
    ln_bytes = 5 * 2 * D * 4                     # LN params + bias2 (double-buffered, tiny)

    # ---- Path A: weights fully resident (1-D grid over row tiles) ----------
    resident_bytes = (
        2 * 2 * D * H * wsize                    # W1/W2 (conservatively x2 buffers)
        + 2 * 2 * tile_m * D * xsize             # x / out tiles, double-buffered
        + 2 * tile_m * H * 4                     # fc1 intermediate / StarReLU temps
        + ln_bytes
    )
    use_resident = (not force_stream) and resident_bytes <= budget

    def _limit(nbytes):
        return min(max(int(nbytes * 1.5) + (4 << 20), 32 << 20), budget)

    if use_resident:
        grid = (rows_p // tile_m,)
        out = pl.pallas_call(
            metaformer_resident_kernel,
            out_shape=jax.ShapeDtypeStruct((rows_p, D), x.dtype),
            grid=grid,
            in_specs=[
                pl.BlockSpec((tile_m, D), lambda i: (i, 0)),        # x rows
                pl.BlockSpec((1, D), lambda i: (0, 0)),             # ln1 gamma
                pl.BlockSpec((1, D), lambda i: (0, 0)),             # ln1 beta
                pl.BlockSpec((1, D), lambda i: (0, 0)),             # ln2 gamma
                pl.BlockSpec((1, D), lambda i: (0, 0)),             # ln2 beta
                pl.BlockSpec((D, H), lambda i: (0, 0)),             # W1: constant index -> DMA'd once
                pl.BlockSpec((H, D), lambda i: (0, 0)),             # s*W2: constant index -> DMA'd once
                pl.BlockSpec((1, D), lambda i: (0, 0)),             # bias2
            ],
            out_specs=pl.BlockSpec((tile_m, D), lambda i: (i, 0)),
            compiler_params=pltpu.CompilerParams(
                dimension_semantics=("parallel",),
                vmem_limit_bytes=_limit(resident_bytes)),
        )(x2d, *ln_args, w1, w2, bias2)
        return out[:rows].reshape(B, N, D)

    # ---- Path B: stream W1/W2 in H chunks (large D on small-VMEM chips) ----
    def _stream_bytes(th):
        return (2 * 2 * D * th * wsize                  # W1/W2 chunks, 2 buffers each
                + 2 * 2 * tile_m * D * xsize            # x / out tiles, 2 buffers each
                + tile_m * D * (4 + wsize + 4)          # y1 / n2 / acc scratch
                + 2 * tile_m * th * 4                   # fc1 intermediate + temps
                + ln_bytes)

    if tile_h is None:
        tile_h = H
        while _stream_bytes(tile_h) > budget and tile_h % 2 == 0 and tile_h > 128:
            tile_h //= 2
    tile_h = min(tile_h, H)
    assert H % tile_h == 0, "hidden dim must be divisible by tile_h"

    grid = (rows_p // tile_m, H // tile_h)              # rows parallel, H reduction last
    out = pl.pallas_call(
        metaformer_stream_kernel,
        out_shape=jax.ShapeDtypeStruct((rows_p, D), x.dtype),
        grid=grid,
        in_specs=[
            pl.BlockSpec((tile_m, D), lambda i, h: (i, 0)),         # x rows (not re-fetched over h)
            pl.BlockSpec((1, D), lambda i, h: (0, 0)),              # ln1 gamma
            pl.BlockSpec((1, D), lambda i, h: (0, 0)),              # ln1 beta
            pl.BlockSpec((1, D), lambda i, h: (0, 0)),              # ln2 gamma
            pl.BlockSpec((1, D), lambda i, h: (0, 0)),              # ln2 beta
            pl.BlockSpec((D, tile_h), lambda i, h: (0, h)),         # W1 chunk
            pl.BlockSpec((tile_h, D), lambda i, h: (h, 0)),         # s*W2 chunk
            pl.BlockSpec((1, D), lambda i, h: (0, 0)),              # bias2
        ],
        out_specs=pl.BlockSpec((tile_m, D), lambda i, h: (i, 0)),
        scratch_shapes=[
            pltpu.VMEM((tile_m, D), jnp.float32),        # y1
            pltpu.VMEM((tile_m, D), matmul_dtype),       # LN2(y1), MXU-ready
            pltpu.VMEM((tile_m, D), jnp.float32),        # fc2 accumulator
        ],
        compiler_params=pltpu.CompilerParams(
            dimension_semantics=("parallel", "arbitrary"),
            vmem_limit_bytes=_limit(_stream_bytes(tile_h))),
    )(x2d, *ln_args, w1, w2, bias2)
    return out[:rows].reshape(B, N, D)


# ---------------------------------------------------------------------------
# Reference & test
# ---------------------------------------------------------------------------

def metaformer_block_ref(x, params, matmul_dtype=jnp.bfloat16):
    """Pure-JAX reference mirroring the kernel's bf16-matmul / f32-accum math."""
    g1, b1 = params["g1"][0], params["b1"][0]
    g2, b2 = params["g2"][0], params["b2"][0]
    s, b = params["star_sb"][0], params["star_sb"][1]
    y1 = x + _layernorm(x, g1, b1)
    n2 = _layernorm(y1, g2, b2)
    h = jnp.dot(n2.astype(matmul_dtype), params["w1"].astype(matmul_dtype),
                preferred_element_type=jnp.float32)
    a = s * jnp.maximum(h, 0.0) ** 2 + b
    o = jnp.dot(a.astype(matmul_dtype), params["w2"].astype(matmul_dtype),
                preferred_element_type=jnp.float32)
    return (y1 + o).astype(x.dtype)


def make_params(key, dim, mlp_ratio=4):
    """Deterministic synthetic parameters (shapes per the module __init__)."""
    hidden = int(mlp_ratio * dim)
    k1, k2, k3, k4, k5, k6 = jax.random.split(key, 6)
    return {
        "g1": (1.0 + 0.1 * jax.random.normal(k1, (1, dim))).astype(jnp.float32),
        "b1": (0.1 * jax.random.normal(k2, (1, dim))).astype(jnp.float32),
        "g2": (1.0 + 0.1 * jax.random.normal(k3, (1, dim))).astype(jnp.float32),
        "b2": (0.1 * jax.random.normal(k4, (1, dim))).astype(jnp.float32),
        # nn.Linear stores (out, in); pre-transposed so the kernel does x @ W
        "w1": (jax.random.normal(k5, (dim, hidden)) / jnp.sqrt(dim)).astype(jnp.float32),
        "w2": (jax.random.normal(k6, (hidden, dim)) / jnp.sqrt(hidden)).astype(jnp.float32),
        # StarReLU scale (init 1.0) and bias (init 0.0)
        "star_sb": jnp.array([1.0, 0.0], dtype=jnp.float32),
    }


if __name__ == "__main__":
    key = jax.random.PRNGKey(0)
    kx, kp = jax.random.split(key)

    # Small but TPU-friendly: 14x14 = 196 tokens (module default size=14),
    # D=128 (full lane width), hidden = 4*D = 512.
    B, N, D = 2, 196, 128
    x = jax.random.normal(kx, (B, N, D), dtype=jnp.float32)
    params = make_params(kp, D)

    ref = metaformer_block_ref(x, params)

    # Path A (default here): weights fully resident, 1-D grid over row tiles.
    out_resident = jax.block_until_ready(metaformer_block(x, params))
    # Path B: H-streaming fallback (exercised explicitly so it stays tested).
    out_stream = jax.block_until_ready(
        metaformer_block(x, params, force_stream=True, tile_h=256))

    for name, out in (("resident", out_resident), ("stream", out_stream)):
        assert out.shape == x.shape and out.dtype == x.dtype
        max_err = float(jnp.max(jnp.abs(out - ref)))
        assert jnp.allclose(out, ref, atol=2e-2, rtol=2e-2), (
            f"{name} path mismatch vs. JAX reference, max abs err {max_err}")

    print("KERNEL_OK")
</pallas_src>

<mosaic_0001>
module attributes {stable_mosaic.version = 11 : i64} {
  func.func @metaformer_resident_kernel(%arg0: i32, %arg1: memref<56x128xf32, #tpu.memory_space<vmem>>, %arg2: memref<1x128xf32, #tpu.memory_space<vmem>>, %arg3: memref<1x128xf32, #tpu.memory_space<vmem>>, %arg4: memref<1x128xf32, #tpu.memory_space<vmem>>, %arg5: memref<1x128xf32, #tpu.memory_space<vmem>>, %arg6: memref<128x512xbf16, #tpu.memory_space<vmem>>, %arg7: memref<512x128xbf16, #tpu.memory_space<vmem>>, %arg8: memref<1x128xf32, #tpu.memory_space<vmem>>, %arg9: memref<56x128xf32, #tpu.memory_space<vmem>>) attributes {dimension_semantics = [#tpu.dimension_semantics<parallel>], iteration_bounds = array<i64: 7>, scalar_prefetch = 0 : i64, scratch_operands = 0 : i64, tpu.core_type = #tpu.core_type<tc>, window_params = [{transform_indices = @transform_0, window_bounds = array<i64: 56, 128>}, {pipeline_mode = #tpu.pipeline_mode<synchronous>, transform_indices = @transform_1, window_bounds = array<i64: 1, 128>}, {pipeline_mode = #tpu.pipeline_mode<synchronous>, transform_indices = @transform_2, window_bounds = array<i64: 1, 128>}, {pipeline_mode = #tpu.pipeline_mode<synchronous>, transform_indices = @transform_3, window_bounds = array<i64: 1, 128>}, {pipeline_mode = #tpu.pipeline_mode<synchronous>, transform_indices = @transform_4, window_bounds = array<i64: 1, 128>}, {pipeline_mode = #tpu.pipeline_mode<synchronous>, transform_indices = @transform_5, window_bounds = array<i64: 128, 512>}, {pipeline_mode = #tpu.pipeline_mode<synchronous>, transform_indices = @transform_6, window_bounds = array<i64: 512, 128>}, {pipeline_mode = #tpu.pipeline_mode<synchronous>, transform_indices = @transform_7, window_bounds = array<i64: 1, 128>}, {transform_indices = @transform_8, window_bounds = array<i64: 56, 128>}]} {
    %c0 = arith.constant 0 : index
    %c0_0 = arith.constant 0 : index
    %0 = vector.load %arg1[%c0, %c0_0] : memref<56x128xf32, #tpu.memory_space<vmem>>, vector<56x128xf32>
    %c0_1 = arith.constant 0 : index
    %c0_2 = arith.constant 0 : index
    %1 = vector.load %arg2[%c0_1, %c0_2] : memref<1x128xf32, #tpu.memory_space<vmem>>, vector<1x128xf32>
    %c0_3 = arith.constant 0 : index
    %c0_4 = arith.constant 0 : index
    %2 = vector.load %arg3[%c0_3, %c0_4] : memref<1x128xf32, #tpu.memory_space<vmem>>, vector<1x128xf32>
    %cst = arith.constant dense<0.000000e+00> : vector<56xf32>
    %3 = vector.multi_reduction <add>, %0, %cst [1] : vector<56x128xf32> to vector<56xf32>
    %4 = vector.shape_cast %3 : vector<56xf32> to vector<56x1xf32>
    %cst_5 = arith.constant 1.280000e+02 : f32
    %5 = vector.broadcast %cst_5 : f32 to vector<56x1xf32>
    %6 = arith.divf %4, %5 : vector<56x1xf32>
    %7 = vector.broadcast %6 : vector<56x1xf32> to vector<56x128xf32>
    %8 = arith.subf %0, %7 : vector<56x128xf32>
    %9 = arith.mulf %8, %8 : vector<56x128xf32>
    %cst_6 = arith.constant dense<0.000000e+00> : vector<56xf32>
    %10 = vector.multi_reduction <add>, %9, %cst_6 [1] : vector<56x128xf32> to vector<56xf32>
    %11 = vector.shape_cast %10 : vector<56xf32> to vector<56x1xf32>
    %cst_7 = arith.constant 1.280000e+02 : f32
    %12 = vector.broadcast %cst_7 : f32 to vector<56x1xf32>
    %13 = arith.divf %11, %12 : vector<56x1xf32>
    %14 = vector.broadcast %6 : vector<56x1xf32> to vector<56x128xf32>
    %15 = arith.subf %0, %14 : vector<56x128xf32>
    %cst_8 = arith.constant 9.99999974E-6 : f32
    %16 = vector.broadcast %cst_8 : f32 to vector<56x1xf32>
    %17 = arith.addf %13, %16 : vector<56x1xf32>
    %18 = math.rsqrt %17 : vector<56x1xf32>
    %19 = vector.broadcast %18 : vector<56x1xf32> to vector<56x128xf32>
    %20 = arith.mulf %15, %19 : vector<56x128xf32>
    %21 = vector.broadcast %1 : vector<1x128xf32> to vector<56x128xf32>
    %22 = arith.mulf %20, %21 : vector<56x128xf32>
    %23 = vector.broadcast %2 : vector<1x128xf32> to vector<56x128xf32>
    %24 = arith.addf %22, %23 : vector<56x128xf32>
    %25 = arith.addf %0, %24 : vector<56x128xf32>
    %c0_9 = arith.constant 0 : index
    %c0_10 = arith.constant 0 : index
    %26 = vector.load %arg4[%c0_9, %c0_10] : memref<1x128xf32, #tpu.memory_space<vmem>>, vector<1x128xf32>
    %c0_11 = arith.constant 0 : index
    %c0_12 = arith.constant 0 : index
    %27 = vector.load %arg5[%c0_11, %c0_12] : memref<1x128xf32, #tpu.memory_space<vmem>>, vector<1x128xf32>
    %cst_13 = arith.constant dense<0.000000e+00> : vector<56xf32>
    %28 = vector.multi_reduction <add>, %25, %cst_13 [1] : vector<56x128xf32> to vector<56xf32>
    %29 = vector.shape_cast %28 : vector<56xf32> to vector<56x1xf32>
    %cst_14 = arith.constant 1.280000e+02 : f32
    %30 = vector.broadcast %cst_14 : f32 to vector<56x1xf32>
    %31 = arith.divf %29, %30 : vector<56x1xf32>
    %32 = vector.broadcast %31 : vector<56x1xf32> to vector<56x128xf32>
    %33 = arith.subf %25, %32 : vector<56x128xf32>
    %34 = arith.mulf %33, %33 : vector<56x128xf32>
    %cst_15 = arith.constant dense<0.000000e+00> : vector<56xf32>
    %35 = vector.multi_reduction <add>, %34, %cst_15 [1] : vector<56x128xf32> to vector<56xf32>
    %36 = vector.shape_cast %35 : vector<56xf32> to vector<56x1xf32>
    %cst_16 = arith.constant 1.280000e+02 : f32
    %37 = vector.broadcast %cst_16 : f32 to vector<56x1xf32>
    %38 = arith.divf %36, %37 : vector<56x1xf32>
    %39 = vector.broadcast %31 : vector<56x1xf32> to vector<56x128xf32>
    %40 = arith.subf %25, %39 : vector<56x128xf32>
    %cst_17 = arith.constant 9.99999974E-6 : f32
    %41 = vector.broadcast %cst_17 : f32 to vector<56x1xf32>
    %42 = arith.addf %38, %41 : vector<56x1xf32>
    %43 = math.rsqrt %42 : vector<56x1xf32>
    %44 = vector.broadcast %43 : vector<56x1xf32> to vector<56x128xf32>
    %45 = arith.mulf %40, %44 : vector<56x128xf32>
    %46 = vector.broadcast %26 : vector<1x128xf32> to vector<56x128xf32>
    %47 = arith.mulf %45, %46 : vector<56x128xf32>
    %48 = vector.broadcast %27 : vector<1x128xf32> to vector<56x128xf32>
    %49 = arith.addf %47, %48 : vector<56x128xf32>
    %50 = arith.truncf %49 : vector<56x128xf32> to vector<56x128xbf16>
    %c0_18 = arith.constant 0 : index
    %c0_19 = arith.constant 0 : index
    %51 = vector.load %arg6[%c0_18, %c0_19] : memref<128x512xbf16, #tpu.memory_space<vmem>>, vector<128x512xbf16>
    %cst_20 = arith.constant dense<0.000000e+00> : vector<56x512xf32>
    %52 = tpu.matmul %50, %51, %cst_20 {dimension_numbers = #tpu.dot_dimension_numbers<[1], [0], [0], [1], [0, 0, 1, 1], [], []>} : vector<56x128xbf16>, vector<128x512xbf16>, vector<56x512xf32> -> vector<56x512xf32>
    %cst_21 = arith.constant 0.000000e+00 : f32
    %53 = vector.broadcast %cst_21 : f32 to vector<56x512xf32>
    %54 = arith.maximumf %52, %53 : vector<56x512xf32>
    %55 = arith.mulf %54, %54 : vector<56x512xf32>
    %56 = arith.truncf %55 : vector<56x512xf32> to vector<56x512xbf16>
    %c0_22 = arith.constant 0 : index
    %c0_23 = arith.constant 0 : index
    %57 = vector.load %arg7[%c0_22, %c0_23] : memref<512x128xbf16, #tpu.memory_space<vmem>>, vector<512x128xbf16>
    %cst_24 = arith.constant dense<0.000000e+00> : vector<56x128xf32>
    %58 = tpu.matmul %56, %57, %cst_24 {dimension_numbers = #tpu.dot_dimension_numbers<[1], [0], [0], [1], [0, 0, 1, 1], [], []>} : vector<56x512xbf16>, vector<512x128xbf16>, vector<56x128xf32> -> vector<56x128xf32>
    %59 = arith.addf %25, %58 : vector<56x128xf32>
    %c0_25 = arith.constant 0 : index
    %c0_26 = arith.constant 0 : index
    %60 = vector.load %arg8[%c0_25, %c0_26] : memref<1x128xf32, #tpu.memory_space<vmem>>, vector<1x128xf32>
    %61 = vector.broadcast %60 : vector<1x128xf32> to vector<56x128xf32>
    %62 = arith.addf %59, %61 : vector<56x128xf32>
    %c0_27 = arith.constant 0 : index
    %c0_28 = arith.constant 0 : index
    %63 = vector.load %arg9[%c0_27, %c0_28] : memref<56x128xf32, #tpu.memory_space<vmem>>, vector<56x128xf32>
    tpu.vector_store %arg9[%c0_27, %c0_28], %62 {strides = array<i32>} : memref<56x128xf32, #tpu.memory_space<vmem>>, vector<56x128xf32>,
    return
  }
  func.func @transform_0(%arg0: i32) -> (i32, i32) {
    %c0_i32 = arith.constant 0 : i32
    %c0_i32_0 = arith.constant 0 : i32
    return %arg0, %c0_i32 : i32, i32
  }
  func.func @transform_1(%arg0: i32) -> (i32, i32) {
    %c0_i32 = arith.constant 0 : i32
    %c0_i32_0 = arith.constant 0 : i32
    %c0_i32_1 = arith.constant 0 : i32
    return %c0_i32, %c0_i32_0 : i32, i32
  }
  func.func @transform_2(%arg0: i32) -> (i32, i32) {
    %c0_i32 = arith.constant 0 : i32
    %c0_i32_0 = arith.constant 0 : i32
    %c0_i32_1 = arith.constant 0 : i32
    return %c0_i32, %c0_i32_0 : i32, i32
  }
  func.func @transform_3(%arg0: i32) -> (i32, i32) {
    %c0_i32 = arith.constant 0 : i32
    %c0_i32_0 = arith.constant 0 : i32
    %c0_i32_1 = arith.constant 0 : i32
    return %c0_i32, %c0_i32_0 : i32, i32
  }
  func.func @transform_4(%arg0: i32) -> (i32, i32) {
    %c0_i32 = arith.constant 0 : i32
    %c0_i32_0 = arith.constant 0 : i32
    %c0_i32_1 = arith.constant 0 : i32
    return %c0_i32, %c0_i32_0 : i32, i32
  }
  func.func @transform_5(%arg0: i32) -> (i32, i32) {
    %c0_i32 = arith.constant 0 : i32
    %c0_i32_0 = arith.constant 0 : i32
    %c0_i32_1 = arith.constant 0 : i32
    return %c0_i32, %c0_i32_0 : i32, i32
  }
  func.func @transform_6(%arg0: i32) -> (i32, i32) {
    %c0_i32 = arith.constant 0 : i32
    %c0_i32_0 = arith.constant 0 : i32
    %c0_i32_1 = arith.constant 0 : i32
    return %c0_i32, %c0_i32_0 : i32, i32
  }
  func.func @transform_7(%arg0: i32) -> (i32, i32) {
    %c0_i32 = arith.constant 0 : i32
    %c0_i32_0 = arith.constant 0 : i32
    %c0_i32_1 = arith.constant 0 : i32
    return %c0_i32, %c0_i32_0 : i32, i32
  }
  func.func @transform_8(%arg0: i32) -> (i32, i32) {
    %c0_i32 = arith.constant 0 : i32
    %c0_i32_0 = arith.constant 0 : i32
    return %arg0, %c0_i32 : i32, i32
  }
}

</mosaic_0001>

<llo_original>
// kernel: tpu_custom_call.1
$region0: #{tpu_custom_call.1}
  #allocation0 [shape = 'u32[]', space=smem, size = 0x4, offset = 0x4, fixed_abs, tag = 'smem constant byte address 0x4 - core index']
  #allocation1 [shape = 'u32[144,128]{1,0:T(1,128)}', space=vmem, size = 0x12000, scoped, tag = 'internal scratch']
  %s0 = inlined_call_operand.hbm [shape: f32[392,128], index: 0, kind: input, shape index: {}]
  %s1 = inlined_call_operand.vmem [shape: f32[1,128], index: 1, kind: input, shape index: {}]
  %s2 = inlined_call_operand.vmem [shape: f32[1,128], index: 2, kind: input, shape index: {}]
  %s3 = inlined_call_operand.vmem [shape: f32[1,128], index: 3, kind: input, shape index: {}]
  %s4 = inlined_call_operand.vmem [shape: f32[1,128], index: 4, kind: input, shape index: {}]
  %s5 = inlined_call_operand.hbm [shape: bf16[128,512], index: 5, kind: input, shape index: {}]
  %s6 = inlined_call_operand.hbm [shape: bf16[512,128], index: 6, kind: input, shape index: {}]
  %s7 = inlined_call_operand.vmem [shape: f32[1,128], index: 7, kind: input, shape index: {}]
  %s8 = inlined_call_operand.hbm [shape: f32[392,128], index: 8, kind: output, shape index: {}]
  %s9 = sld [smem:[#allocation0]]
  $region77: #{tpu_custom_call.1} parent=0
    _
  %s11 = ssub.s32 1, %s9
  %s12 = scalar_select 0, %s11, %s9
  $region1: #{tpu_custom_call.1} parent=0
    #allocation2 [shape = 'u8[57344]{0}', space=vmem, size = 0xe000, scoped, tag = 'input window, operand 0']
    #allocation3 [shape = 's32[2]{0}', space=sflag, size = 0x8, scoped, tag = 'scoped memory for tpu_custom_call.1']
    #allocation4 [shape = 's32[2]{0}', space=sflag, size = 0x8, scoped, tag = 'scoped memory for tpu_custom_call.1']
    #allocation5 [shape = 'u8[131072]{0}', space=vmem, size = 0x20000, scoped, tag = 'input window, operand 5, single buffered']
    #allocation6 [shape = 's32[1]{0}', space=sflag, size = 0x4, scoped, tag = 'scoped memory for tpu_custom_call.1']
    #allocation7 [shape = 'u8[131072]{0}', space=vmem, size = 0x20000, scoped, tag = 'input window, operand 6, single buffered']
    #allocation8 [shape = 'u8[57344]{0}', space=vmem, size = 0xe000, scoped, tag = 'output window, operand 0']
    %13 = vsyncpa [#allocation3], 0
    %s14 = scalar_lea.sflag [#allocation3], 1
    %15 = vsyncpa %s14, 0
    %16 = vsyncpa [#allocation6], 0
    %17 = vsyncpa [#allocation4], 0
    %s18 = scalar_lea.sflag [#allocation4], 1
    %19 = vsyncpa %s18, 0
    loop: start=0, step=1, limit=9
    $region2: #{tpu_custom_call.1} parent=1 // loop_pre_header
      _
    $region3: #{tpu_custom_call.1} parent=1 // loop_header
      %s21 = sphi 0, %s25
      %p22 = scmp.ge.s32.totalorder %s21, 9
      %s31 = sphi 0, %s33
      %s34 = sphi 0, %s31
      %s35 = sphi 0, %s34
      %s51 = sphi 0, %s35
      %s55 = sphi 0, %s55
      %s57 = sphi 0, %s55
      %s58 = sphi 0, %s57
      %s72 = sphi 0, %s58
      %s76 = sphi 0, %s76
      %s78 = sphi 0, %s76
      %s79 = sphi 0, %s78
      %s93 = sphi 0, %s79
      %s97 = sphi 0, %s97
      %s99 = sphi 0, %s97
      %s100 = sphi 0, %s99
      %s114 = sphi 0, %s100
      %s118 = sphi 0, %s118
      %s120 = sphi 0, %s118
      %s121 = sphi 0, %s120
      %s135 = sphi 0, %s121
      %s139 = sphi 0, %s139
      %s141 = sphi 0, %s139
      %s142 = sphi 0, %s141
      %s156 = sphi 0, %s142
      %s160 = sphi 0, %s160
      %s162 = sphi 0, %s160
      %s163 = sphi 0, %s162
      %s177 = sphi 0, %s163
      %s181 = sphi 0, %s181
      %s183 = sphi 0, %s181
      %s184 = sphi 0, %s183
      %s198 = sphi 0, %s184
      %s204 = sphi 0, %s206
      %s207 = sphi 0, %s204
      %s208 = sphi 0, %s207
      %s224 = sphi 0, %s208
    $region4: #{tpu_custom_call.1} parent=1 // loop_header_branch
      %24 = sbr.rel (%p22) target = $region8
    $region5: #{tpu_custom_call.1} parent=1 // loop_body
      %s26 = ssub.s32 %s21, 1
      %s27 = ssub.s32 %s21, 2
      %s28 = sadd.s32 %s21, 1
      %s29 = ssub.s32 %s21, %s28
      %p30 = scmp.eq.s32.totalorder %s29, 0
      %s32 = sadd.s32 %s31, 1
      %s33 = scalar_select %p30, %s31, %s32
      %p36 = pneg %p30
      %p37 = scmp.eq.s32.totalorder %s21, 6
      %p38 = por %p36, %p37
      %p39 = scmp.ne.s32.totalorder %s31, %s34
      %p40 = scmp.eq.s32.totalorder %s21, 0
      %p41 = por %p39, %p40
      %p42 = scmp.ne.s32.totalorder %s31, %s34
      %p43 = scmp.eq.s32.totalorder %s26, 6
      %p44 = por %p42, %p43
      %p45 = scmp.ne.s32.totalorder %s34, %s35
      %p46 = scmp.eq.s32.totalorder %s26, 0
      %p47 = por %p45, %p46
      %p48 = scmp.ne.s32.totalorder %s34, %s35
      %p49 = scmp.eq.s32.totalorder %s27, 6
      %p50 = por %p48, %p49
      %p52 = scmp.ne.s32.totalorder %s35, %s51
      %p53 = scmp.eq.s32.totalorder %s27, 0
      %p54 = por %p52, %p53
      %s56 = sadd.s32 %s55, 1
      %p59 = scmp.eq.s32.totalorder %s21, 6
      %p60 = scmp.ne.s32.totalorder %s55, %s57
      %p61 = scmp.eq.s32.totalorder %s21, 0
      %p62 = por %p60, %p61
      %p63 = scmp.ne.s32.totalorder %s55, %s57
      %p64 = scmp.eq.s32.totalorder %s26, 6
      %p65 = por %p63, %p64
      %p66 = scmp.ne.s32.totalorder %s57, %s58
      %p67 = scmp.eq.s32.totalorder %s26, 0
      %p68 = por %p66, %p67
      %p69 = scmp.ne.s32.totalorder %s57, %s58
      %p70 = scmp.eq.s32.totalorder %s27, 6
      %p71 = por %p69, %p70
      %p73 = scmp.ne.s32.totalorder %s58, %s72
      %p74 = scmp.eq.s32.totalorder %s27, 0
      %p75 = por %p73, %p74
      %s77 = sadd.s32 %s76, 1
      %p80 = scmp.eq.s32.totalorder %s21, 6
      %p81 = scmp.ne.s32.totalorder %s76, %s78
      %p82 = scmp.eq.s32.totalorder %s21, 0
      %p83 = por %p81, %p82
      %p84 = scmp.ne.s32.totalorder %s76, %s78
      %p85 = scmp.eq.s32.totalorder %s26, 6
      %p86 = por %p84, %p85
      %p87 = scmp.ne.s32.totalorder %s78, %s79
      %p88 = scmp.eq.s32.totalorder %s26, 0
      %p89 = por %p87, %p88
      %p90 = scmp.ne.s32.totalorder %s78, %s79
      %p91 = scmp.eq.s32.totalorder %s27, 6
      %p92 = por %p90, %p91
      %p94 = scmp.ne.s32.totalorder %s79, %s93
      %p95 = scmp.eq.s32.totalorder %s27, 0
      %p96 = por %p94, %p95
      %s98 = sadd.s32 %s97, 1
      %p101 = scmp.eq.s32.totalorder %s21, 6
      %p102 = scmp.ne.s32.totalorder %s97, %s99
      %p103 = scmp.eq.s32.totalorder %s21, 0
      %p104 = por %p102, %p103
      %p105 = scmp.ne.s32.totalorder %s97, %s99
      %p106 = scmp.eq.s32.totalorder %s26, 6
      %p107 = por %p105, %p106
      %p108 = scmp.ne.s32.totalorder %s99, %s100
      %p109 = scmp.eq.s32.totalorder %s26, 0
      %p110 = por %p108, %p109
      %p111 = scmp.ne.s32.totalorder %s99, %s100
      %p112 = scmp.eq.s32.totalorder %s27, 6
      %p113 = por %p111, %p112
      %p115 = scmp.ne.s32.totalorder %s100, %s114
      %p116 = scmp.eq.s32.totalorder %s27, 0
      %p117 = por %p115, %p116
      %s119 = sadd.s32 %s118, 1
      %p122 = scmp.eq.s32.totalorder %s21, 6
      %p123 = scmp.ne.s32.totalorder %s118, %s120
      %p124 = scmp.eq.s32.totalorder %s21, 0
      %p125 = por %p123, %p124
      %p126 = scmp.ne.s32.totalorder %s118, %s120
      %p127 = scmp.eq.s32.totalorder %s26, 6
      %p128 = por %p126, %p127
      %p129 = scmp.ne.s32.totalorder %s120, %s121
      %p130 = scmp.eq.s32.totalorder %s26, 0
      %p131 = por %p129, %p130
      %p132 = scmp.ne.s32.totalorder %s120, %s121
      %p133 = scmp.eq.s32.totalorder %s27, 6
      %p134 = por %p132, %p133
      %p136 = scmp.ne.s32.totalorder %s121, %s135
      %p137 = scmp.eq.s32.totalorder %s27, 0
      %p138 = por %p136, %p137
      %s140 = sadd.s32 %s139, 1
      %p143 = scmp.eq.s32.totalorder %s21, 6
      %p144 = scmp.ne.s32.totalorder %s139, %s141
      %p145 = scmp.eq.s32.totalorder %s21, 0
      %p146 = por %p144, %p145
      %p147 = scmp.ne.s32.totalorder %s139, %s141
      %p148 = scmp.eq.s32.totalorder %s26, 6
      %p149 = por %p147, %p148
      %p150 = scmp.ne.s32.totalorder %s141, %s142
      %p151 = scmp.eq.s32.totalorder %s26, 0
      %p152 = por %p150, %p151
      %p153 = scmp.ne.s32.totalorder %s141, %s142
      %p154 = scmp.eq.s32.totalorder %s27, 6
      %p155 = por %p153, %p154
      %p157 = scmp.ne.s32.totalorder %s142, %s156
      %p158 = scmp.eq.s32.totalorder %s27, 0
      %p159 = por %p157, %p158
      %s161 = sadd.s32 %s160, 1
      %p164 = scmp.eq.s32.totalorder %s21, 6
      %p165 = scmp.ne.s32.totalorder %s160, %s162
      %p166 = scmp.eq.s32.totalorder %s21, 0
      %p167 = por %p165, %p166
      %p168 = scmp.ne.s32.totalorder %s160, %s162
      %p169 = scmp.eq.s32.totalorder %s26, 6
      %p170 = por %p168, %p169
      %p171 = scmp.ne.s32.totalorder %s162, %s163
      %p172 = scmp.eq.s32.totalorder %s26, 0
      %p173 = por %p171, %p172
      %p174 = scmp.ne.s32.totalorder %s162, %s163
      %p175 = scmp.eq.s32.totalorder %s27, 6
      %p176 = por %p174, %p175
      %p178 = scmp.ne.s32.totalorder %s163, %s177
      %p179 = scmp.eq.s32.totalorder %s27, 0
      %p180 = por %p178, %p179
      %s182 = sadd.s32 %s181, 1
      %p185 = scmp.eq.s32.totalorder %s21, 6
      %p186 = scmp.ne.s32.totalorder %s181, %s183
      %p187 = scmp.eq.s32.totalorder %s21, 0
      %p188 = por %p186, %p187
      %p189 = scmp.ne.s32.totalorder %s181, %s183
      %p190 = scmp.eq.s32.totalorder %s26, 6
      %p191 = por %p189, %p190
      %p192 = scmp.ne.s32.totalorder %s183, %s184
      %p193 = scmp.eq.s32.totalorder %s26, 0
      %p194 = por %p192, %p193
      %p195 = scmp.ne.s32.totalorder %s183, %s184
      %p196 = scmp.eq.s32.totalorder %s27, 6
      %p197 = por %p195, %p196
      %p199 = scmp.ne.s32.totalorder %s184, %s198
      %p200 = scmp.eq.s32.totalorder %s27, 0
      %p201 = por %p199, %p200
      %s202 = ssub.s32 %s21, %s28
      %p203 = scmp.eq.s32.totalorder %s202, 0
      %s205 = sadd.s32 %s204, 1
      %s206 = scalar_select %p203, %s204, %s205
      %p209 = pneg %p203
      %p210 = scmp.eq.s32.totalorder %s21, 6
      %p211 = por %p209, %p210
      %p212 = scmp.ne.s32.totalorder %s204, %s207
      %p213 = scmp.eq.s32.totalorder %s21, 0
      %p214 = por %p212, %p213
      %p215 = scmp.ne.s32.totalorder %s204, %s207
      %p216 = scmp.eq.s32.totalorder %s26, 6
      %p217 = por %p215, %p216
      %p218 = scmp.ne.s32.totalorder %s207, %s208
      %p219 = scmp.eq.s32.totalorder %s26, 0
      %p220 = por %p218, %p219
      %p221 = scmp.ne.s32.totalorder %s207, %s208
      %p222 = scmp.eq.s32.totalorder %s27, 6
      %p223 = por %p221, %p222
      %p225 = scmp.ne.s32.totalorder %s208, %s224
      %p226 = scmp.eq.s32.totalorder %s27, 0
      %p227 = por %p225, %p226
      %p228 = scmp.le.s32.totalorder 1, %s21
      %p229 = scmp.lt.s32.totalorder %s21, 8
      %p230 = pnand %p228, %p229
      %p231 = pneg %p230
      // Predicated region
      $region9: #{tpu_custom_call.1} parent=5 // pred_check
        _
      $region10: #{tpu_custom_call.1} parent=5 // pred_check_branch
        %233 = sbr.rel (%p230) target = $region12
      $region11: #{tpu_custom_call.1} parent=5 // pred_region
        %s234 = ssub.s32 %s21, 1
        // Predicated region
        $region13: #{tpu_custom_call.1} parent=11 // pred_check
          %p235 = pneg %p68
        $region14: #{tpu_custom_call.1} parent=11 // pred_check_branch
          %237 = sbr.rel (%p235) target = $region16
        $region15: #{tpu_custom_call.1} parent=11 // pred_region
          _
        $region16: #{tpu_custom_call.1} parent=11 // pred_fallthru
          _
        // Predicated region
        $region17: #{tpu_custom_call.1} parent=11 // pred_check
          %p238 = pneg %p89
        $region18: #{tpu_custom_call.1} parent=11 // pred_check_branch
          %240 = sbr.rel (%p238) target = $region20
        $region19: #{tpu_custom_call.1} parent=11 // pred_region
          _
        $region20: #{tpu_custom_call.1} parent=11 // pred_fallthru
          _
        // Predicated region
        $region21: #{tpu_custom_call.1} parent=11 // pred_check
          %p241 = pneg %p110
        $region22: #{tpu_custom_call.1} parent=11 // pred_check_branch
          %243 = sbr.rel (%p241) target = $region24
        $region23: #{tpu_custom_call.1} parent=11 // pred_region
          _
        $region24: #{tpu_custom_call.1} parent=11 // pred_fallthru
          _
        // Predicated region
        $region25: #{tpu_custom_call.1} parent=11 // pred_check
          %p244 = pneg %p131
        $region26: #{tpu_custom_call.1} parent=11 // pred_check_branch
          %246 = sbr.rel (%p244) target = $region28
        $region27: #{tpu_custom_call.1} parent=11 // pred_region
          _
        $region28: #{tpu_custom_call.1} parent=11 // pred_fallthru
          _
        // Predicated region
        $region29: #{tpu_custom_call.1} parent=11 // pred_check
          %p247 = pneg %p152
        $region30: #{tpu_custom_call.1} parent=11 // pred_check_branch
          %249 = sbr.rel (%p247) target = $region32
        $region31: #{tpu_custom_call.1} parent=11 // pred_region
          %s251 = ssub.s32 4096, 4096
          %252 = vsyncadd [#allocation6], %s251
          %s253 = sshll.u32 [#allocation5], 4
          %s254 = int_to_ptr.vmem [resolvable:$true] %s253
          %259 = dma.hbm_to_vmem [thread:$0]  %s5, 4096, %s254, [#allocation6], 256, 256, 16
        $region32: #{tpu_custom_call.1} parent=11 // pred_fallthru
          _
        // Predicated region
        $region33: #{tpu_custom_call.1} parent=11 // pred_check
          %p260 = pneg %p173
        $region34: #{tpu_custom_call.1} parent=11 // pred_check_branch
          %262 = sbr.rel (%p260) target = $region36
        $region35: #{tpu_custom_call.1} parent=11 // pred_region
          %s264 = ssub.s32 4096, 4096
          %265 = vsyncadd [#allocation6], %s264
          %s266 = sshll.u32 [#allocation7], 4
          %s267 = int_to_ptr.vmem [resolvable:$true] %s266
          %272 = dma.hbm_to_vmem [thread:$0]  %s6, 4096, %s267, [#allocation6], 64, 64, 4
        $region36: #{tpu_custom_call.1} parent=11 // pred_fallthru
          _
        // Predicated region
        $region37: #{tpu_custom_call.1} parent=11 // pred_check
          %p273 = pneg %p194
        $region38: #{tpu_custom_call.1} parent=11 // pred_check_branch
          %275 = sbr.rel (%p273) target = $region40
        $region39: #{tpu_custom_call.1} parent=11 // pred_region
          _
        $region40: #{tpu_custom_call.1} parent=11 // pred_fallthru
          _
      $region12: #{tpu_custom_call.1} parent=5 // pred_fallthru
        _
      %p276 = scmp.lt.s32.totalorder %s21, 7
      // Predicated region
      $region41: #{tpu_custom_call.1} parent=5 // pred_check
        %p277 = pneg %p276
      $region42: #{tpu_custom_call.1} parent=5 // pred_check_branch
        %279 = sbr.rel (%p277) target = $region44
      $region43: #{tpu_custom_call.1} parent=5 // pred_region
        // Predicated region
        $region45: #{tpu_custom_call.1} parent=43 // pred_check
          %p280 = pneg %p41
        $region46: #{tpu_custom_call.1} parent=43 // pred_check_branch
          %282 = sbr.rel (%p280) target = $region48
        $region47: #{tpu_custom_call.1} parent=43 // pred_region
          %s283 = sand.u32 %s31, 1
          %s284 = scalar_lea.sflag [#allocation3], %s283
          %s285 = sand.u32 %s31, 1
          %s286 = smul.addr %s285, 56
          %s287 = scalar_lea.vmem [#allocation2], %s286
          %s288 = smul.u32 7, %s21
          %s290 = ssub.s32 896, 896
          %291 = vsyncadd %s284, %s290
          %s292 = smul.addr %s288, 128
          %s293 = scalar_lea.hbm %s0, %s292
          %s294 = sshll.u32 %s287, 4
          %s295 = int_to_ptr.vmem [resolvable:$true] %s294
          %300 = dma.hbm_to_vmem [thread:$0]  %s293, 896, %s295, %s284, 128, 128, 8
        $region48: #{tpu_custom_call.1} parent=43 // pred_fallthru
          _
      $region44: #{tpu_custom_call.1} parent=5 // pred_fallthru
        _
      %p301 = scmp.le.s32.totalorder 1, %s21
      %p302 = scmp.lt.s32.totalorder %s21, 8
      %p303 = pnand %p301, %p302
      %p304 = pneg %p303
      // Predicated region
      $region49: #{tpu_custom_call.1} parent=5 // pred_check
        _
      $region50: #{tpu_custom_call.1} parent=5 // pred_check_branch
        %306 = sbr.rel (%p303) target = $region52
      $region51: #{tpu_custom_call.1} parent=5 // pred_region
        %s307 = ssub.s32 %s21, 1
        %s308 = sand.u32 %s34, 1
        %s309 = scalar_lea.sflag [#allocation3], %s308
        %s310 = sand.u32 %s34, 1
        %s311 = smul.addr %s310, 56
        %s312 = scalar_lea.vmem [#allocation2], %s311
        // Predicated region
        $region53: #{tpu_custom_call.1} parent=51 // pred_check
          %p313 = pneg %p47
        $region54: #{tpu_custom_call.1} parent=51 // pred_check_branch
          %315 = sbr.rel (%p313) target = $region56
        $region55: #{tpu_custom_call.1} parent=51 // pred_region
          %316 = dma.done %s309, 896
        $region56: #{tpu_custom_call.1} parent=51 // pred_fallthru
          _
        // Predicated region
        $region57: #{tpu_custom_call.1} parent=51 // pred_check
          %p317 = pneg %p152
        $region58: #{tpu_custom_call.1} parent=51 // pred_check_branch
          %319 = sbr.rel (%p317) target = $region60
        $region59: #{tpu_custom_call.1} parent=51 // pred_region
          %320 = dma.done [#allocation6], 4096
        $region60: #{tpu_custom_call.1} parent=51 // pred_fallthru
          _
        // Predicated region
        $region61: #{tpu_custom_call.1} parent=51 // pred_check
          %p321 = pneg %p173
        $region62: #{tpu_custom_call.1} parent=51 // pred_check_branch
          %323 = sbr.rel (%p321) target = $region64
        $region63: #{tpu_custom_call.1} parent=51 // pred_region
          %324 = dma.done [#allocation6], 4096
        $region64: #{tpu_custom_call.1} parent=51 // pred_fallthru
          _
        %s325 = sand.u32 %s34, 1
        %s326 = scalar_lea.sflag [#allocation3], %s325
        %s327 = sand.u32 %s34, 1
        %s328 = smul.addr %s327, 56
        %s329 = scalar_lea.vmem [#allocation2], %s328
        %p330 = pneg %p47
        %p331 = pneg %p44
        %p332 = pneg %p68
        %p333 = pneg %p65
        %p334 = pneg %p89
        %p335 = pneg %p86
        %p336 = pneg %p110
        %p337 = pneg %p107
        %p338 = pneg %p131
        %p339 = pneg %p128
        %p340 = pneg %p152
        %p341 = pneg %p149
        %p342 = pneg %p173
        %p343 = pneg %p170
        %p344 = pneg %p194
        %p345 = pneg %p191
        %p346 = pneg %p220
        %p347 = pneg %p217
        %s348 = sand.u32 %s207, 1
        %s349 = scalar_lea.sflag [#allocation4], %s348
        %s350 = sand.u32 %s207, 1
        %s351 = smul.addr %s350, 56
        %s352 = scalar_lea.vmem [#allocation8], %s351
        %s353 = smul.u32 7, %s26
        %s354 = smul.u32 7, %s26
        %v356 = vld [vmem:[%s312] sm:$0xff]
        %v357 = vld [vmem:[%s312 + $0x8] sm:$0xff]
        %v358 = vld [vmem:[%s312 + $0x10] sm:$0xff]
        %v359 = vld [vmem:[%s312 + $0x18] sm:$0xff]
        %v360 = vld [vmem:[%s312 + $0x20] sm:$0xff]
        %v361 = vld [vmem:[%s312 + $0x28] sm:$0xff]
        %v362 = vld [vmem:[%s312 + $0x30] sm:$0xff]
        %v363 = vld [vmem:[%s1] sm:$0x1]
        %v364 = vld [vmem:[%s2] sm:$0x1]
        %365 = vadd.xlane.f32.xlu0 %v356
        %v366 = vpop.xlane.xlu0 %365
        %367 = vadd.xlane.f32.xlu0 %v357
        %v368 = vpop.xlane.xlu0 %367
        %369 = vadd.xlane.f32.xlu0 %v358
        %v370 = vpop.xlane.xlu0 %369
        %371 = vadd.xlane.f32.xlu0 %v359
        %v372 = vpop.xlane.xlu0 %371
        %373 = vadd.xlane.f32.xlu0 %v360
        %v374 = vpop.xlane.xlu0 %373
        %375 = vadd.xlane.f32.xlu0 %v361
        %v376 = vpop.xlane.xlu0 %375
        %377 = vadd.xlane.f32.xlu0 %v362
        %v378 = vpop.xlane.xlu0 %377
        %v379 = vrcp.pop 128.0
        %v380 = vmul.f32 %v366, %v379
        %v381 = vmul.f32 %v368, %v379
        %v382 = vmul.f32 %v370, %v379
        %v383 = vmul.f32 %v372, %v379
        %v384 = vmul.f32 %v374, %v379
        %v385 = vmul.f32 %v376, %v379
        %v386 = vmul.f32 %v378, %v379
        %v387 = vsub.f32 %v356, %v380
        %v388 = vsub.f32 %v357, %v381
        %v389 = vsub.f32 %v358, %v382
        %v390 = vsub.f32 %v359, %v383
        %v391 = vsub.f32 %v360, %v384
        %v392 = vsub.f32 %v361, %v385
        %v393 = vsub.f32 %v362, %v386
        %v394 = vmul.f32 %v387, %v387
        %v395 = vmul.f32 %v388, %v388
        %v396 = vmul.f32 %v389, %v389
        %v397 = vmul.f32 %v390, %v390
        %v398 = vmul.f32 %v391, %v391
        %v399 = vmul.f32 %v392, %v392
        %v400 = vmul.f32 %v393, %v393
        %401 = vadd.xlane.f32.xlu0 %v394
        %v402 = vpop.xlane.xlu0 %401
        %403 = vadd.xlane.f32.xlu0 %v395
        %v404 = vpop.xlane.xlu0 %403
        %405 = vadd.xlane.f32.xlu0 %v396
        %v406 = vpop.xlane.xlu0 %405
        %407 = vadd.xlane.f32.xlu0 %v397
        %v408 = vpop.xlane.xlu0 %407
        %409 = vadd.xlane.f32.xlu0 %v398
        %v410 = vpop.xlane.xlu0 %409
        %411 = vadd.xlane.f32.xlu0 %v399
        %v412 = vpop.xlane.xlu0 %411
        %413 = vadd.xlane.f32.xlu0 %v400
        %v414 = vpop.xlane.xlu0 %413
        %v415 = vmul.f32 %v402, %v379
        %v416 = vmul.f32 %v404, %v379
        %v417 = vmul.f32 %v406, %v379
        %v418 = vmul.f32 %v408, %v379
        %v419 = vmul.f32 %v410, %v379
        %v420 = vmul.f32 %v412, %v379
        %v421 = vmul.f32 %v414, %v379
        %v422 = vadd.f32 %v415, 1e-05
        %v423 = vadd.f32 %v416, 1e-05
        %v424 = vadd.f32 %v417, 1e-05
        %v425 = vadd.f32 %v418, 1e-05
        %v426 = vadd.f32 %v419, 1e-05
        %v427 = vadd.f32 %v420, 1e-05
        %v428 = vadd.f32 %v421, 1e-05
        %v429 = vrsqrt.pop %v422
        %v430 = vrsqrt.pop %v423
        %v431 = vrsqrt.pop %v424
        %v432 = vrsqrt.pop %v425
        %v433 = vrsqrt.pop %v426
        %v434 = vrsqrt.pop %v427
        %v435 = vrsqrt.pop %v428
        %v436 = vmul.f32 %v387, %v429
        %v437 = vmul.f32 %v388, %v430
        %v438 = vmul.f32 %v389, %v431
        %v439 = vmul.f32 %v390, %v432
        %v440 = vmul.f32 %v391, %v433
        %v441 = vmul.f32 %v392, %v434
        %v442 = vmul.f32 %v393, %v435
        %v444 = vlaneseq
        %v445 = vshrl.u32 %v444, 7
        %v446 = vsub.s32 0, %v445
        %v447 = vrot.slane %v363, %v446
        %v449 = vmul.f32 %v436, %v447
        %v450 = vmul.f32 %v437, %v447
        %v451 = vmul.f32 %v438, %v447
        %v452 = vmul.f32 %v439, %v447
        %v453 = vmul.f32 %v440, %v447
        %v454 = vmul.f32 %v441, %v447
        %v455 = vmul.f32 %v442, %v447
        %v457 = vlaneseq
        %v458 = vshrl.u32 %v457, 7
        %v459 = vsub.s32 0, %v458
        %v460 = vrot.slane %v364, %v459
        %v462 = vadd.f32 %v449, %v460
        %v463 = vadd.f32 %v450, %v460
        %v464 = vadd.f32 %v451, %v460
        %v465 = vadd.f32 %v452, %v460
        %v466 = vadd.f32 %v453, %v460
        %v467 = vadd.f32 %v454, %v460
        %v468 = vadd.f32 %v455, %v460
        %v469 = vadd.f32 %v356, %v462
        %v470 = vadd.f32 %v357, %v463
        %v471 = vadd.f32 %v358, %v464
        %v472 = vadd.f32 %v359, %v465
        %v473 = vadd.f32 %v360, %v466
        %v474 = vadd.f32 %v361, %v467
        %v475 = vadd.f32 %v362, %v468
        %v476 = vld [vmem:[%s3] sm:$0x1]
        %v477 = vld [vmem:[%s4] sm:$0x1]
        %478 = vadd.xlane.f32.xlu0 %v469
        %v479 = vpop.xlane.xlu0 %478
        %480 = vadd.xlane.f32.xlu0 %v470
        %v481 = vpop.xlane.xlu0 %480
        %482 = vadd.xlane.f32.xlu0 %v471
        %v483 = vpop.xlane.xlu0 %482
        %484 = vadd.xlane.f32.xlu0 %v472
        %v485 = vpop.xlane.xlu0 %484
        %486 = vadd.xlane.f32.xlu0 %v473
        %v487 = vpop.xlane.xlu0 %486
        %488 = vadd.xlane.f32.xlu0 %v474
        %v489 = vpop.xlane.xlu0 %488
        %490 = vadd.xlane.f32.xlu0 %v475
        %v491 = vpop.xlane.xlu0 %490
        %v492 = vmul.f32 %v479, %v379
        %v493 = vmul.f32 %v481, %v379
        %v494 = vmul.f32 %v483, %v379
        %v495 = vmul.f32 %v485, %v379
        %v496 = vmul.f32 %v487, %v379
        %v497 = vmul.f32 %v489, %v379
        %v498 = vmul.f32 %v491, %v379
        %v499 = vsub.f32 %v469, %v492
        %v500 = vsub.f32 %v470, %v493
        %v501 = vsub.f32 %v471, %v494
        %v502 = vsub.f32 %v472, %v495
        %v503 = vsub.f32 %v473, %v496
        %v504 = vsub.f32 %v474, %v497
        %v505 = vsub.f32 %v475, %v498
        %v506 = vmul.f32 %v499, %v499
        %v507 = vmul.f32 %v500, %v500
        %v508 = vmul.f32 %v501, %v501
        %v509 = vmul.f32 %v502, %v502
        %v510 = vmul.f32 %v503, %v503
        %v511 = vmul.f32 %v504, %v504
        %v512 = vmul.f32 %v505, %v505
        %513 = vadd.xlane.f32.xlu0 %v506
        %v514 = vpop.xlane.xlu0 %513
        %515 = vadd.xlane.f32.xlu0 %v507
        %v516 = vpop.xlane.xlu0 %515
        %517 = vadd.xlane.f32.xlu0 %v508
        %v518 = vpop.xlane.xlu0 %517
        %519 = vadd.xlane.f32.xlu0 %v509
        %v520 = vpop.xlane.xlu0 %519
        %521 = vadd.xlane.f32.xlu0 %v510
        %v522 = vpop.xlane.xlu0 %521
        %523 = vadd.xlane.f32.xlu0 %v511
        %v524 = vpop.xlane.xlu0 %523
        %525 = vadd.xlane.f32.xlu0 %v512
        %v526 = vpop.xlane.xlu0 %525
        %v527 = vmul.f32 %v514, %v379
        %v528 = vmul.f32 %v516, %v379
        %v529 = vmul.f32 %v518, %v379
        %v530 = vmul.f32 %v520, %v379
        %v531 = vmul.f32 %v522, %v379
        %v532 = vmul.f32 %v524, %v379
        %v533 = vmul.f32 %v526, %v379
        %v534 = vadd.f32 %v527, 1e-05
        %v535 = vadd.f32 %v528, 1e-05
        %v536 = vadd.f32 %v529, 1e-05
        %v537 = vadd.f32 %v530, 1e-05
        %v538 = vadd.f32 %v531, 1e-05
        %v539 = vadd.f32 %v532, 1e-05
        %v540 = vadd.f32 %v533, 1e-05
        %v541 = vrsqrt.pop %v534
        %v542 = vrsqrt.pop %v535
        %v543 = vrsqrt.pop %v536
        %v544 = vrsqrt.pop %v537
        %v545 = vrsqrt.pop %v538
        %v546 = vrsqrt.pop %v539
        %v547 = vrsqrt.pop %v540
        %v548 = vmul.f32 %v499, %v541
        %v549 = vmul.f32 %v500, %v542
        %v550 = vmul.f32 %v501, %v543
        %v551 = vmul.f32 %v502, %v544
        %v552 = vmul.f32 %v503, %v545
        %v553 = vmul.f32 %v504, %v546
        %v554 = vmul.f32 %v505, %v547
        %v556 = vlaneseq
        %v557 = vshrl.u32 %v556, 7
        %v558 = vsub.s32 0, %v557
        %v559 = vrot.slane %v476, %v558
        %v561 = vmul.f32 %v548, %v559
        %v562 = vmul.f32 %v549, %v559
        %v563 = vmul.f32 %v550, %v559
        %v564 = vmul.f32 %v551, %v559
        %v565 = vmul.f32 %v552, %v559
        %v566 = vmul.f32 %v553, %v559
        %v567 = vmul.f32 %v554, %v559
        %v569 = vlaneseq
        %v570 = vshrl.u32 %v569, 7
        %v571 = vsub.s32 0, %v570
        %v572 = vrot.slane %v477, %v571
        %v574 = vadd.f32 %v561, %v572
        %v575 = vadd.f32 %v562, %v572
        %v576 = vadd.f32 %v563, %v572
        %v577 = vadd.f32 %v564, %v572
        %v578 = vadd.f32 %v565, %v572
        %v579 = vadd.f32 %v566, %v572
        %v580 = vadd.f32 %v567, %v572
        %v581 = vpack.c.bf16 %v575, %v574
        %v582 = vpack.c.bf16 %v577, %v576
        %v583 = vpack.c.bf16 %v579, %v578
        %v584 = vpack.c.bf16 %v580, %v580
        %v585 = vld [vmem:[#allocation5] sm:$0xff]
        %v586 = vld [vmem:[#allocation5 + $0x8] sm:$0xff]
        %v587 = vld [vmem:[#allocation5 + $0x10] sm:$0xff]
        %v588 = vld [vmem:[#allocation5 + $0x18] sm:$0xff]
        %v589 = vld [vmem:[#allocation5 + $0x20] sm:$0xff]
        %v590 = vld [vmem:[#allocation5 + $0x28] sm:$0xff]
        %v591 = vld [vmem:[#allocation5 + $0x30] sm:$0xff]
        %v592 = vld [vmem:[#allocation5 + $0x38] sm:$0xff]
        %v593 = vld [vmem:[#allocation5 + $0x40] sm:$0xff]
        %v594 = vld [vmem:[#allocation5 + $0x48] sm:$0xff]
        %v595 = vld [vmem:[#allocation5 + $0x50] sm:$0xff]
        %v596 = vld [vmem:[#allocation5 + $0x58] sm:$0xff]
        %v597 = vld [vmem:[#allocation5 + $0x60] sm:$0xff]
        %v598 = vld [vmem:[#allocation5 + $0x68] sm:$0xff]
        %v599 = vld [vmem:[#allocation5 + $0x70] sm:$0xff]
        %v600 = vld [vmem:[#allocation5 + $0x78] sm:$0xff]
        %v601 = vld [vmem:[#allocation5 + $0x80] sm:$0xff]
        %v602 = vld [vmem:[#allocation5 + $0x88] sm:$0xff]
        %v603 = vld [vmem:[#allocation5 + $0x90] sm:$0xff]
        %v604 = vld [vmem:[#allocation5 + $0x98] sm:$0xff]
        %v605 = vld [vmem:[#allocation5 + $0xa0] sm:$0xff]
        %v606 = vld [vmem:[#allocation5 + $0xa8] sm:$0xff]
        %v607 = vld [vmem:[#allocation5 + $0xb0] sm:$0xff]
        %v608 = vld [vmem:[#allocation5 + $0xb8] sm:$0xff]
        %v609 = vld [vmem:[#allocation5 + $0xc0] sm:$0xff]
        %v610 = vld [vmem:[#allocation5 + $0xc8] sm:$0xff]
        %v611 = vld [vmem:[#allocation5 + $0xd0] sm:$0xff]
        %v612 = vld [vmem:[#allocation5 + $0xd8] sm:$0xff]
        %v613 = vld [vmem:[#allocation5 + $0xe0] sm:$0xff]
        %v614 = vld [vmem:[#allocation5 + $0xe8] sm:$0xff]
        %v615 = vld [vmem:[#allocation5 + $0xf0] sm:$0xff]
        %v616 = vld [vmem:[#allocation5 + $0xf8] sm:$0xff]
        %v649 = vunpack.c.l.b16 %v585
        %v650 = vunpack.c.h.b16 %v585
        %v651 = vunpack.c.l.b16 %v586
        %v652 = vunpack.c.h.b16 %v586
        %v653 = vunpack.c.l.b16 %v587
        %v654 = vunpack.c.h.b16 %v587
        %v655 = vunpack.c.l.b16 %v588
        %v656 = vunpack.c.h.b16 %v588
        %v657 = vunpack.c.l.b16 %v589
        %v658 = vunpack.c.h.b16 %v589
        %v659 = vunpack.c.l.b16 %v590
        %v660 = vunpack.c.h.b16 %v590
        %v661 = vunpack.c.l.b16 %v591
        %v662 = vunpack.c.h.b16 %v591
        %v663 = vunpack.c.l.b16 %v592
        %v664 = vunpack.c.h.b16 %v592
        %v665 = vunpack.c.l.b16 %v593
        %v666 = vunpack.c.h.b16 %v593
        %v667 = vunpack.c.l.b16 %v594
        %v668 = vunpack.c.h.b16 %v594
        %v669 = vunpack.c.l.b16 %v595
        %v670 = vunpack.c.h.b16 %v595
        %v671 = vunpack.c.l.b16 %v596
        %v672 = vunpack.c.h.b16 %v596
        %v673 = vunpack.c.l.b16 %v597
        %v674 = vunpack.c.h.b16 %v597
        %v675 = vunpack.c.l.b16 %v598
        %v676 = vunpack.c.h.b16 %v598
        %v677 = vunpack.c.l.b16 %v599
        %v678 = vunpack.c.h.b16 %v599
        %v679 = vunpack.c.l.b16 %v600
        %v680 = vunpack.c.h.b16 %v600
        %v681 = vunpack.c.l.b16 %v601
        %v682 = vunpack.c.h.b16 %v601
        %v683 = vunpack.c.l.b16 %v602
        %v684 = vunpack.c.h.b16 %v602
        %v685 = vunpack.c.l.b16 %v603
        %v686 = vunpack.c.h.b16 %v603
        %v687 = vunpack.c.l.b16 %v604
        %v688 = vunpack.c.h.b16 %v604
        %v689 = vunpack.c.l.b16 %v605
        %v690 = vunpack.c.h.b16 %v605
        %v691 = vunpack.c.l.b16 %v606
        %v692 = vunpack.c.h.b16 %v606
        %v693 = vunpack.c.l.b16 %v607
        %v694 = vunpack.c.h.b16 %v607
        %v695 = vunpack.c.l.b16 %v608
        %v696 = vunpack.c.h.b16 %v608
        %v697 = vunpack.c.l.b16 %v609
        %v698 = vunpack.c.h.b16 %v609
        %v699 = vunpack.c.l.b16 %v610
        %v700 = vunpack.c.h.b16 %v610
        %v701 = vunpack.c.l.b16 %v611
        %v702 = vunpack.c.h.b16 %v611
        %v703 = vunpack.c.l.b16 %v612
        %v704 = vunpack.c.h.b16 %v612
        %v705 = vunpack.c.l.b16 %v613
        %v706 = vunpack.c.h.b16 %v613
        %v707 = vunpack.c.l.b16 %v614
        %v708 = vunpack.c.h.b16 %v614
        %v709 = vunpack.c.l.b16 %v615
        %v710 = vunpack.c.h.b16 %v615
        %v711 = vunpack.c.l.b16 %v616
        %v712 = vunpack.c.h.b16 %v616
        %v713 = vpack.c.b16 %v653, %v649
        %v714 = vpack.c.b16 %v654, %v650
        %v715 = vpack.c.b16 %v655, %v651
        %v716 = vpack.c.b16 %v656, %v652
        %v717 = vpack.c.b16 %v661, %v657
        %v718 = vpack.c.b16 %v662, %v658
        %v719 = vpack.c.b16 %v663, %v659
        %v720 = vpack.c.b16 %v664, %v660
        %v721 = vpack.c.b16 %v669, %v665
        %v722 = vpack.c.b16 %v670, %v666
        %v723 = vpack.c.b16 %v671, %v667
        %v724 = vpack.c.b16 %v672, %v668
        %v725 = vpack.c.b16 %v677, %v673
        %v726 = vpack.c.b16 %v678, %v674
        %v727 = vpack.c.b16 %v679, %v675
        %v728 = vpack.c.b16 %v680, %v676
        %v729 = vpack.c.b16 %v685, %v681
        %v730 = vpack.c.b16 %v686, %v682
        %v731 = vpack.c.b16 %v687, %v683
        %v732 = vpack.c.b16 %v688, %v684
        %v733 = vpack.c.b16 %v693, %v689
        %v734 = vpack.c.b16 %v694, %v690
        %v735 = vpack.c.b16 %v695, %v691
        %v736 = vpack.c.b16 %v696, %v692
        %v737 = vpack.c.b16 %v701, %v697
        %v738 = vpack.c.b16 %v702, %v698
        %v739 = vpack.c.b16 %v703, %v699
        %v740 = vpack.c.b16 %v704, %v700
        %v741 = vpack.c.b16 %v709, %v705
        %v742 = vpack.c.b16 %v710, %v706
        %v743 = vpack.c.b16 %v711, %v707
        %v744 = vpack.c.b16 %v712, %v708
        %777 = vmatprep.subr.bf16.mxu0 %v714
        %778 = vmatpush1.bf16.msra.mxu0 %v713
        %779 = vmatprep.subr.bf16.mxu0 %v718
        %780 = vmatpush1.bf16.msra.mxu0 %v717
        %781 = vmatprep.subr.bf16.mxu0 %v722
        %782 = vmatpush1.bf16.msra.mxu0 %v721
        %783 = vmatprep.subr.bf16.mxu0 %v726
        %784 = vmatpush1.bf16.msra.mxu0 %v725
        %785 = vmatprep.subr.bf16.mxu0 %v730
        %786 = vmatpush1.bf16.msra.mxu0 %v729
        %787 = vmatprep.subr.bf16.mxu0 %v734
        %788 = vmatpush1.bf16.msra.mxu0 %v733
        %789 = vmatprep.subr.bf16.mxu0 %v738
        %790 = vmatpush1.bf16.msra.mxu0 %v737
        %791 = vmatprep.subr.bf16.mxu0 %v742
        %792 = vmatpush1.bf16.msra.mxu0 %v741
        %793 = vmatprep.subr.bf16.mxu0 0
        %794 = vmatpush1.bf16.msra.mxu0 0
        %795 = vmatprep.subr.bf16.mxu0 0
        %796 = vmatpush1.bf16.msra.mxu0 0
        %797 = vmatprep.subr.bf16.mxu0 0
        %798 = vmatpush1.bf16.msra.mxu0 0
        %799 = vmatprep.subr.bf16.mxu0 0
        %800 = vmatpush1.bf16.msra.mxu0 0
        %801 = vmatprep.subr.bf16.mxu0 0
        %802 = vmatpush1.bf16.msra.mxu0 0
        %803 = vmatprep.subr.bf16.mxu0 0
        %804 = vmatpush1.bf16.msra.mxu0 0
        %805 = vmatprep.subr.bf16.mxu0 0
        %806 = vmatpush1.bf16.msra.mxu0 0
        %807 = vmatprep.subr.bf16.mxu0 0
        %808 = vmatpush1.bf16.msra.mxu0 0
        %809 = vmatprep.mubr.bf16.mxu0 0
        %810 = vmatmul.mubr.bf16.gmra.mrb[0].mxu0 %v581
        %v811 = vpop.f32.mrb[0].mxu0
        %v812 = vadd.f32 0.0, %v811
        %v813 = vpop.f32.mrb[0].mxu0
        %v814 = vadd.f32 0.0, %v813
        %v815 = vpop.f32.mrb[0].mxu0
        %v816 = vadd.f32 0.0, %v815
        %v817 = vpop.f32.mrb[0].mxu0
        %v818 = vadd.f32 0.0, %v817
        %819 = vmatprep.mubr.bf16.mxu0 0
        %820 = vmatmul.mubr.bf16.gmra.mrb[0].mxu0 %v582
        %v821 = vpop.f32.mrb[0].mxu0
        %v822 = vadd.f32 0.0, %v821
        %v823 = vpop.f32.mrb[0].mxu0
        %v824 = vadd.f32 0.0, %v823
        %v825 = vpop.f32.mrb[0].mxu0
        %v826 = vadd.f32 0.0, %v825
        %v827 = vpop.f32.mrb[0].mxu0
        %v828 = vadd.f32 0.0, %v827
        %829 = vmatprep.mubr.bf16.mxu0 0
        %830 = vmatmul.mubr.bf16.gmra.mrb[0].mxu0 %v583
        %v831 = vpop.f32.mrb[0].mxu0
        %v832 = vadd.f32 0.0, %v831
        %v833 = vpop.f32.mrb[0].mxu0
        %v834 = vadd.f32 0.0, %v833
        %v835 = vpop.f32.mrb[0].mxu0
        %v836 = vadd.f32 0.0, %v835
        %v837 = vpop.f32.mrb[0].mxu0
        %v838 = vadd.f32 0.0, %v837
        %839 = vmatprep.mubr.bf16.mxu0 0
        %840 = vmatmul.mubr.bf16.gmra.mrb[0].mxu0 %v584
        %v841 = vpop.f32.mrb[0].mxu0
        %v842 = vadd.f32 0.0, %v841
        %v843 = vpop.f32.mrb[0].mxu0
        %v844 = vadd.f32 0.0, %v843
        %v845 = vpop.f32.mrb[0].mxu0
        %v846 = vpop.f32.mrb[0].mxu0
        %847 = vdwg.mxu0
        %848 = vmatprep.subr.bf16.mxu0 %v716
        %849 = vmatpush1.bf16.msra.mxu0 %v715
        %850 = vmatprep.subr.bf16.mxu0 %v720
        %851 = vmatpush1.bf16.msra.mxu0 %v719
        %852 = vmatprep.subr.bf16.mxu0 %v724
        %853 = vmatpush1.bf16.msra.mxu0 %v723
        %854 = vmatprep.subr.bf16.mxu0 %v728
        %855 = vmatpush1.bf16.msra.mxu0 %v727
        %856 = vmatprep.subr.bf16.mxu0 %v732
        %857 = vmatpush1.bf16.msra.mxu0 %v731
        %858 = vmatprep.subr.bf16.mxu0 %v736
        %859 = vmatpush1.bf16.msra.mxu0 %v735
        %860 = vmatprep.subr.bf16.mxu0 %v740
        %861 = vmatpush1.bf16.msra.mxu0 %v739
        %862 = vmatprep.subr.bf16.mxu0 %v744
        %863 = vmatpush1.bf16.msra.mxu0 %v743
        %864 = vmatprep.subr.bf16.mxu0 0
        %865 = vmatpush1.bf16.msra.mxu0 0
        %866 = vmatprep.subr.bf16.mxu0 0
        %867 = vmatpush1.bf16.msra.mxu0 0
        %868 = vmatprep.subr.bf16.mxu0 0
        %869 = vmatpush1.bf16.msra.mxu0 0
        %870 = vmatprep.subr.bf16.mxu0 0
        %871 = vmatpush1.bf16.msra.mxu0 0
        %872 = vmatprep.subr.bf16.mxu0 0
        %873 = vmatpush1.bf16.msra.mxu0 0
        %874 = vmatprep.subr.bf16.mxu0 0
        %875 = vmatpush1.bf16.msra.mxu0 0
        %876 = vmatprep.subr.bf16.mxu0 0
        %877 = vmatpush1.bf16.msra.mxu0 0
        %878 = vmatprep.subr.bf16.mxu0 0
        %879 = vmatpush1.bf16.msra.mxu0 0
        %880 = vmatprep.mubr.bf16.mxu0 0
        %881 = vmatmul.mubr.bf16.gmra.mrb[0].mxu0 %v581
        %v882 = vpop.f32.mrb[0].mxu0
        %v883 = vadd.f32 0.0, %v882
        %v884 = vpop.f32.mrb[0].mxu0
        %v885 = vadd.f32 0.0, %v884
        %v886 = vpop.f32.mrb[0].mxu0
        %v887 = vadd.f32 0.0, %v886
        %v888 = vpop.f32.mrb[0].mxu0
        %v889 = vadd.f32 0.0, %v888
        %890 = vmatprep.mubr.bf16.mxu0 0
        %891 = vmatmul.mubr.bf16.gmra.mrb[0].mxu0 %v582
        %v892 = vpop.f32.mrb[0].mxu0
        %v893 = vadd.f32 0.0, %v892
        %v894 = vpop.f32.mrb[0].mxu0
        %v895 = vadd.f32 0.0, %v894
        %v896 = vpop.f32.mrb[0].mxu0
        %v897 = vadd.f32 0.0, %v896
        %v898 = vpop.f32.mrb[0].mxu0
        %v899 = vadd.f32 0.0, %v898
        %900 = vmatprep.mubr.bf16.mxu0 0
        %901 = vmatmul.mubr.bf16.gmra.mrb[0].mxu0 %v583
        %v902 = vpop.f32.mrb[0].mxu0
        %v903 = vadd.f32 0.0, %v902
        %v904 = vpop.f32.mrb[0].mxu0
        %v905 = vadd.f32 0.0, %v904
        %v906 = vpop.f32.mrb[0].mxu0
        %v907 = vadd.f32 0.0, %v906
        %v908 = vpop.f32.mrb[0].mxu0
        %v909 = vadd.f32 0.0, %v908
        %910 = vmatprep.mubr.bf16.mxu0 0
        %911 = vmatmul.mubr.bf16.gmra.mrb[0].mxu0 %v584
        %v912 = vpop.f32.mrb[0].mxu0
        %v913 = vadd.f32 0.0, %v912
        %v914 = vpop.f32.mrb[0].mxu0
        %v915 = vadd.f32 0.0, %v914
        %v916 = vpop.f32.mrb[0].mxu0
        %v917 = vpop.f32.mrb[0].mxu0
        %918 = vdwg.mxu0
        %v919 = vmax.f32 %v812, 0.0
        %v920 = vmax.f32 %v814, 0.0
        %v921 = vmax.f32 %v883, 0.0
        %v922 = vmax.f32 %v885, 0.0
        %v923 = vmax.f32 %v816, 0.0
        %v924 = vmax.f32 %v818, 0.0
        %v925 = vmax.f32 %v887, 0.0
        %v926 = vmax.f32 %v889, 0.0
        %v927 = vmax.f32 %v822, 0.0
        %v928 = vmax.f32 %v824, 0.0
        %v929 = vmax.f32 %v893, 0.0
        %v930 = vmax.f32 %v895, 0.0
        %v931 = vmax.f32 %v826, 0.0
        %v932 = vmax.f32 %v828, 0.0
        %v933 = vmax.f32 %v897, 0.0
        %v934 = vmax.f32 %v899, 0.0
        %v935 = vmax.f32 %v832, 0.0
        %v936 = vmax.f32 %v834, 0.0
        %v937 = vmax.f32 %v903, 0.0
        %v938 = vmax.f32 %v905, 0.0
        %v939 = vmax.f32 %v836, 0.0
        %v940 = vmax.f32 %v838, 0.0
        %v941 = vmax.f32 %v907, 0.0
        %v942 = vmax.f32 %v909, 0.0
        %v943 = vmax.f32 %v842, 0.0
        %v944 = vmax.f32 %v844, 0.0
        %v945 = vmax.f32 %v913, 0.0
        %v946 = vmax.f32 %v915, 0.0
        %v947 = vmul.f32 %v919, %v919
        %v948 = vmul.f32 %v920, %v920
        %v949 = vmul.f32 %v921, %v921
        %v950 = vmul.f32 %v922, %v922
        %v951 = vmul.f32 %v923, %v923
        %v952 = vmul.f32 %v924, %v924
        %v953 = vmul.f32 %v925, %v925
        %v954 = vmul.f32 %v926, %v926
        %v955 = vmul.f32 %v927, %v927
        %v956 = vmul.f32 %v928, %v928
        %v957 = vmul.f32 %v929, %v929
        %v958 = vmul.f32 %v930, %v930
        %v959 = vmul.f32 %v931, %v931
        %v960 = vmul.f32 %v932, %v932
        %v961 = vmul.f32 %v933, %v933
        %v962 = vmul.f32 %v934, %v934
        %v963 = vmul.f32 %v935, %v935
        %v964 = vmul.f32 %v936, %v936
        %v965 = vmul.f32 %v937, %v937
        %v966 = vmul.f32 %v938, %v938
        %v967 = vmul.f32 %v939, %v939
        %v968 = vmul.f32 %v940, %v940
        %v969 = vmul.f32 %v941, %v941
        %v970 = vmul.f32 %v942, %v942
        %v971 = vmul.f32 %v943, %v943
        %v972 = vmul.f32 %v944, %v944
        %v973 = vmul.f32 %v945, %v945
        %v974 = vmul.f32 %v946, %v946
        %v975 = vpack.c.bf16 %v951, %v947
        %v976 = vpack.c.bf16 %v952, %v948
        %v977 = vpack.c.bf16 %v953, %v949
        %v978 = vpack.c.bf16 %v954, %v950
        %v979 = vpack.c.bf16 %v959, %v955
        %v980 = vpack.c.bf16 %v960, %v956
        %v981 = vpack.c.bf16 %v961, %v957
        %v982 = vpack.c.bf16 %v962, %v958
        %v983 = vpack.c.bf16 %v967, %v963
        %v984 = vpack.c.bf16 %v968, %v964
        %v985 = vpack.c.bf16 %v969, %v965
        %v986 = vpack.c.bf16 %v970, %v966
        %v987 = vpack.c.bf16 %v971, %v971
        %v988 = vpack.c.bf16 %v972, %v972
        %v989 = vpack.c.bf16 %v973, %v973
        %v990 = vpack.c.bf16 %v974, %v974
        %v991 = vld [vmem:[#allocation7] sm:$0xf]
        %v992 = vld [vmem:[#allocation7 + $0x4] sm:$0xf]
        %v993 = vld [vmem:[#allocation7 + $0x8] sm:$0xf]
        %v994 = vld [vmem:[#allocation7 + $0xc] sm:$0xf]
        %v995 = vld [vmem:[#allocation7 + $0x10] sm:$0xf]
        %v996 = vld [vmem:[#allocation7 + $0x14] sm:$0xf]
        %v997 = vld [vmem:[#allocation7 + $0x18] sm:$0xf]
        %v998 = vld [vmem:[#allocation7 + $0x1c] sm:$0xf]
        %v999 = vld [vmem:[#allocation7 + $0x20] sm:$0xf]
        %v1000 = vld [vmem:[#allocation7 + $0x24] sm:$0xf]
        %v1001 = vld [vmem:[#allocation7 + $0x28] sm:$0xf]
        %v1002 = vld [vmem:[#allocation7 + $0x2c] sm:$0xf]
        %v1003 = vld [vmem:[#allocation7 + $0x30] sm:$0xf]
        %v1004 = vld [vmem:[#allocation7 + $0x34] sm:$0xf]
        %v1005 = vld [vmem:[#allocation7 + $0x38] sm:$0xf]
        %v1006 = vld [vmem:[#allocation7 + $0x3c] sm:$0xf]
        %v1007 = vld [vmem:[#allocation7 + $0x40] sm:$0xf]
        %v1008 = vld [vmem:[#allocation7 + $0x44] sm:$0xf]
        %v1009 = vld [vmem:[#allocation7 + $0x48] sm:$0xf]
        %v1010 = vld [vmem:[#allocation7 + $0x4c] sm:$0xf]
        %v1011 = vld [vmem:[#allocation7 + $0x50] sm:$0xf]
        %v1012 = vld [vmem:[#allocation7 + $0x54] sm:$0xf]
        %v1013 = vld [vmem:[#allocation7 + $0x58] sm:$0xf]
        %v1014 = vld [vmem:[#allocation7 + $0x5c] sm:$0xf]
        %v1015 = vld [vmem:[#allocation7 + $0x60] sm:$0xf]
        %v1016 = vld [vmem:[#allocation7 + $0x64] sm:$0xf]
        %v1017 = vld [vmem:[#allocation7 + $0x68] sm:$0xf]
        %v1018 = vld [vmem:[#allocation7 + $0x6c] sm:$0xf]
        %v1019 = vld [vmem:[#allocation7 + $0x70] sm:$0xf]
        %v1020 = vld [vmem:[#allocation7 + $0x74] sm:$0xf]
        %v1021 = vld [vmem:[#allocation7 + $0x78] sm:$0xf]
        %v1022 = vld [vmem:[#allocation7 + $0x7c] sm:$0xf]
        %v1023 = vld [vmem:[#allocation7 + $0x80] sm:$0xf]
        %v1024 = vld [vmem:[#allocation7 + $0x84] sm:$0xf]
        %v1025 = vld [vmem:[#allocation7 + $0x88] sm:$0xf]
        %v1026 = vld [vmem:[#allocation7 + $0x8c] sm:$0xf]
        %v1027 = vld [vmem:[#allocation7 + $0x90] sm:$0xf]
        %v1028 = vld [vmem:[#allocation7 + $0x94] sm:$0xf]
        %v1029 = vld [vmem:[#allocation7 + $0x98] sm:$0xf]
        %v1030 = vld [vmem:[#allocation7 + $0x9c] sm:$0xf]
        %v1031 = vld [vmem:[#allocation7 + $0xa0] sm:$0xf]
        %v1032 = vld [vmem:[#allocation7 + $0xa4] sm:$0xf]
        %v1033 = vld [vmem:[#allocation7 + $0xa8] sm:$0xf]
        %v1034 = vld [vmem:[#allocation7 + $0xac] sm:$0xf]
        %v1035 = vld [vmem:[#allocation7 + $0xb0] sm:$0xf]
        %v1036 = vld [vmem:[#allocation7 + $0xb4] sm:$0xf]
        %v1037 = vld [vmem:[#allocation7 + $0xb8] sm:$0xf]
        %v1038 = vld [vmem:[#allocation7 + $0xbc] sm:$0xf]
        %v1039 = vld [vmem:[#allocation7 + $0xc0] sm:$0xf]
        %v1040 = vld [vmem:[#allocation7 + $0xc4] sm:$0xf]
        %v1041 = vld [vmem:[#allocation7 + $0xc8] sm:$0xf]
        %v1042 = vld [vmem:[#allocation7 + $0xcc] sm:$0xf]
        %v1043 = vld [vmem:[#allocation7 + $0xd0] sm:$0xf]
        %v1044 = vld [vmem:[#allocation7 + $0xd4] sm:$0xf]
        %v1045 = vld [vmem:[#allocation7 + $0xd8] sm:$0xf]
        %v1046 = vld [vmem:[#allocation7 + $0xdc] sm:$0xf]
        %v1047 = vld [vmem:[#allocation7 + $0xe0] sm:$0xf]
        %v1048 = vld [vmem:[#allocation7 + $0xe4] sm:$0xf]
        %v1049 = vld [vmem:[#allocation7 + $0xe8] sm:$0xf]
        %v1050 = vld [vmem:[#allocation7 + $0xec] sm:$0xf]
        %v1051 = vld [vmem:[#allocation7 + $0xf0] sm:$0xf]
        %v1052 = vld [vmem:[#allocation7 + $0xf4] sm:$0xf]
        %v1053 = vld [vmem:[#allocation7 + $0xf8] sm:$0xf]
        %v1054 = vld [vmem:[#allocation7 + $0xfc] sm:$0xf]
        %v1119 = vunpack.c.l.b16 %v991
        %v1120 = vunpack.c.l.b16 %v992
        %v1121 = vunpack.c.l.b16 %v993
        %v1122 = vunpack.c.l.b16 %v994
        %v1123 = vunpack.c.l.b16 %v995
        %v1124 = vunpack.c.l.b16 %v996
        %v1125 = vunpack.c.l.b16 %v997
        %v1126 = vunpack.c.l.b16 %v998
        %v1127 = vunpack.c.l.b16 %v999
        %v1128 = vunpack.c.l.b16 %v1000
        %v1129 = vunpack.c.l.b16 %v1001
        %v1130 = vunpack.c.l.b16 %v1002
        %v1131 = vunpack.c.l.b16 %v1003
        %v1132 = vunpack.c.l.b16 %v1004
        %v1133 = vunpack.c.l.b16 %v1005
        %v1134 = vunpack.c.l.b16 %v1006
        %v1135 = vunpack.c.l.b16 %v1007
        %v1136 = vunpack.c.l.b16 %v1008
        %v1137 = vunpack.c.l.b16 %v1009
        %v1138 = vunpack.c.l.b16 %v1010
        %v1139 = vunpack.c.l.b16 %v1011
        %v1140 = vunpack.c.l.b16 %v1012
        %v1141 = vunpack.c.l.b16 %v1013
        %v1142 = vunpack.c.l.b16 %v1014
        %v1143 = vunpack.c.l.b16 %v1015
        %v1144 = vunpack.c.l.b16 %v1016
        %v1145 = vunpack.c.l.b16 %v1017
        %v1146 = vunpack.c.l.b16 %v1018
        %v1147 = vunpack.c.l.b16 %v1019
        %v1148 = vunpack.c.l.b16 %v1020
        %v1149 = vunpack.c.l.b16 %v1021
        %v1150 = vunpack.c.l.b16 %v1022
        %v1151 = vunpack.c.l.b16 %v1023
        %v1152 = vunpack.c.l.b16 %v1024
        %v1153 = vunpack.c.l.b16 %v1025
        %v1154 = vunpack.c.l.b16 %v1026
        %v1155 = vunpack.c.l.b16 %v1027
        %v1156 = vunpack.c.l.b16 %v1028
        %v1157 = vunpack.c.l.b16 %v1029
        %v1158 = vunpack.c.l.b16 %v1030
        %v1159 = vunpack.c.l.b16 %v1031
        %v1160 = vunpack.c.l.b16 %v1032
        %v1161 = vunpack.c.l.b16 %v1033
        %v1162 = vunpack.c.l.b16 %v1034
        %v1163 = vunpack.c.l.b16 %v1035
        %v1164 = vunpack.c.l.b16 %v1036
        %v1165 = vunpack.c.l.b16 %v1037
        %v1166 = vunpack.c.l.b16 %v1038
        %v1167 = vunpack.c.l.b16 %v1039
        %v1168 = vunpack.c.l.b16 %v1040
        %v1169 = vunpack.c.l.b16 %v1041
        %v1170 = vunpack.c.l.b16 %v1042
        %v1171 = vunpack.c.l.b16 %v1043
        %v1172 = vunpack.c.l.b16 %v1044
        %v1173 = vunpack.c.l.b16 %v1045
        %v1174 = vunpack.c.l.b16 %v1046
        %v1175 = vunpack.c.l.b16 %v1047
        %v1176 = vunpack.c.l.b16 %v1048
        %v1177 = vunpack.c.l.b16 %v1049
        %v1178 = vunpack.c.l.b16 %v1050
        %v1179 = vunpack.c.l.b16 %v1051
        %v1180 = vunpack.c.l.b16 %v1052
        %v1181 = vunpack.c.l.b16 %v1053
        %v1182 = vunpack.c.l.b16 %v1054
        %v1183 = vpack.c.b16 %v1120, %v1119
        %v1184 = vpack.c.b16 %v1122, %v1121
        %v1185 = vpack.c.b16 %v1124, %v1123
        %v1186 = vpack.c.b16 %v1126, %v1125
        %v1187 = vpack.c.b16 %v1128, %v1127
        %v1188 = vpack.c.b16 %v1130, %v1129
        %v1189 = vpack.c.b16 %v1132, %v1131
        %v1190 = vpack.c.b16 %v1134, %v1133
        %v1191 = vpack.c.b16 %v1136, %v1135
        %v1192 = vpack.c.b16 %v1138, %v1137
        %v1193 = vpack.c.b16 %v1140, %v1139
        %v1194 = vpack.c.b16 %v1142, %v1141
        %v1195 = vpack.c.b16 %v1144, %v1143
        %v1196 = vpack.c.b16 %v1146, %v1145
        %v1197 = vpack.c.b16 %v1148, %v1147
        %v1198 = vpack.c.b16 %v1150, %v1149
        %v1199 = vpack.c.b16 %v1152, %v1151
        %v1200 = vpack.c.b16 %v1154, %v1153
        %v1201 = vpack.c.b16 %v1156, %v1155
        %v1202 = vpack.c.b16 %v1158, %v1157
        %v1203 = vpack.c.b16 %v1160, %v1159
        %v1204 = vpack.c.b16 %v1162, %v1161
        %v1205 = vpack.c.b16 %v1164, %v1163
        %v1206 = vpack.c.b16 %v1166, %v1165
        %v1207 = vpack.c.b16 %v1168, %v1167
        %v1208 = vpack.c.b16 %v1170, %v1169
        %v1209 = vpack.c.b16 %v1172, %v1171
        %v1210 = vpack.c.b16 %v1174, %v1173
        %v1211 = vpack.c.b16 %v1176, %v1175
        %v1212 = vpack.c.b16 %v1178, %v1177
        %v1213 = vpack.c.b16 %v1180, %v1179
        %v1214 = vpack.c.b16 %v1182, %v1181
        %1247 = vmatprep.subr.bf16.mxu0 0
        %1248 = vmatpush1.bf16.msra.mxu0 %v1183
        %1249 = vmatprep.subr.bf16.mxu0 0
        %1250 = vmatpush1.bf16.msra.mxu0 %v1184
        %1251 = vmatprep.subr.bf16.mxu0 0
        %1252 = vmatpush1.bf16.msra.mxu0 %v1185
        %1253 = vmatprep.subr.bf16.mxu0 0
        %1254 = vmatpush1.bf16.msra.mxu0 %v1186
        %1255 = vmatprep.subr.bf16.mxu0 0
        %1256 = vmatpush1.bf16.msra.mxu0 %v1187
        %1257 = vmatprep.subr.bf16.mxu0 0
        %1258 = vmatpush1.bf16.msra.mxu0 %v1188
        %1259 = vmatprep.subr.bf16.mxu0 0
        %1260 = vmatpush1.bf16.msra.mxu0 %v1189
        %1261 = vmatprep.subr.bf16.mxu0 0
        %1262 = vmatpush1.bf16.msra.mxu0 %v1190
        %1263 = vmatprep.subr.bf16.mxu0 0
        %1264 = vmatpush1.bf16.msra.mxu0 %v1191
        %1265 = vmatprep.subr.bf16.mxu0 0
        %1266 = vmatpush1.bf16.msra.mxu0 %v1192
        %1267 = vmatprep.subr.bf16.mxu0 0
        %1268 = vmatpush1.bf16.msra.mxu0 %v1193
        %1269 = vmatprep.subr.bf16.mxu0 0
        %1270 = vmatpush1.bf16.msra.mxu0 %v1194
        %1271 = vmatprep.subr.bf16.mxu0 0
        %1272 = vmatpush1.bf16.msra.mxu0 %v1195
        %1273 = vmatprep.subr.bf16.mxu0 0
        %1274 = vmatpush1.bf16.msra.mxu0 %v1196
        %1275 = vmatprep.subr.bf16.mxu0 0
        %1276 = vmatpush1.bf16.msra.mxu0 %v1197
        %1277 = vmatprep.subr.bf16.mxu0 0
        %1278 = vmatpush1.bf16.msra.mxu0 %v1198
        %1279 = vmatprep.mubr.bf16.mxu0 %v976
        %1280 = vmatmul.mubr.bf16.gmra.mrb[0].mxu0 %v975
        %v1281 = vpop.f32.mrb[0].mxu0
        %v1282 = vadd.f32 0.0, %v1281
        %v1283 = vpop.f32.mrb[0].mxu0
        %v1284 = vpop.f32.mrb[0].mxu0
        %v1285 = vadd.f32 0.0, %v1284
        %v1286 = vpop.f32.mrb[0].mxu0
        %1287 = vmatprep.mubr.bf16.mxu0 %v980
        %1288 = vmatmul.mubr.bf16.gmra.mrb[0].mxu0 %v979
        %v1289 = vpop.f32.mrb[0].mxu0
        %v1290 = vadd.f32 0.0, %v1289
        %v1291 = vpop.f32.mrb[0].mxu0
        %v1292 = vpop.f32.mrb[0].mxu0
        %v1293 = vadd.f32 0.0, %v1292
        %v1294 = vpop.f32.mrb[0].mxu0
        %1295 = vmatprep.mubr.bf16.mxu0 %v984
        %1296 = vmatmul.mubr.bf16.gmra.mrb[0].mxu0 %v983
        %v1297 = vpop.f32.mrb[0].mxu0
        %v1298 = vadd.f32 0.0, %v1297
        %v1299 = vpop.f32.mrb[0].mxu0
        %v1300 = vpop.f32.mrb[0].mxu0
        %v1301 = vadd.f32 0.0, %v1300
        %v1302 = vpop.f32.mrb[0].mxu0
        %1303 = vmatprep.mubr.bf16.mxu0 %v988
        %1304 = vmatmul.mubr.bf16.gmra.mrb[0].mxu0 %v987
        %v1305 = vpop.f32.mrb[0].mxu0
        %v1306 = vadd.f32 0.0, %v1305
        %v1307 = vpop.f32.mrb[0].mxu0
        %v1308 = vpop.f32.mrb[0].mxu0
        %v1309 = vpop.f32.mrb[0].mxu0
        %1310 = vdwg.mxu0
        %1311 = vmatprep.subr.bf16.mxu0 0
        %1312 = vmatpush1.bf16.msra.mxu0 %v1199
        %1313 = vmatprep.subr.bf16.mxu0 0
        %1314 = vmatpush1.bf16.msra.mxu0 %v1200
        %1315 = vmatprep.subr.bf16.mxu0 0
        %1316 = vmatpush1.bf16.msra.mxu0 %v1201
        %1317 = vmatprep.subr.bf16.mxu0 0
        %1318 = vmatpush1.bf16.msra.mxu0 %v1202
        %1319 = vmatprep.subr.bf16.mxu0 0
        %1320 = vmatpush1.bf16.msra.mxu0 %v1203
        %1321 = vmatprep.subr.bf16.mxu0 0
        %1322 = vmatpush1.bf16.msra.mxu0 %v1204
        %1323 = vmatprep.subr.bf16.mxu0 0
        %1324 = vmatpush1.bf16.msra.mxu0 %v1205
        %1325 = vmatprep.subr.bf16.mxu0 0
        %1326 = vmatpush1.bf16.msra.mxu0 %v1206
        %1327 = vmatprep.subr.bf16.mxu0 0
        %1328 = vmatpush1.bf16.msra.mxu0 %v1207
        %1329 = vmatprep.subr.bf16.mxu0 0
        %1330 = vmatpush1.bf16.msra.mxu0 %v1208
        %1331 = vmatprep.subr.bf16.mxu0 0
        %1332 = vmatpush1.bf16.msra.mxu0 %v1209
        %1333 = vmatprep.subr.bf16.mxu0 0
        %1334 = vmatpush1.bf16.msra.mxu0 %v1210
        %1335 = vmatprep.subr.bf16.mxu0 0
        %1336 = vmatpush1.bf16.msra.mxu0 %v1211
        %1337 = vmatprep.subr.bf16.mxu0 0
        %1338 = vmatpush1.bf16.msra.mxu0 %v1212
        %1339 = vmatprep.subr.bf16.mxu0 0
        %1340 = vmatpush1.bf16.msra.mxu0 %v1213
        %1341 = vmatprep.subr.bf16.mxu0 0
        %1342 = vmatpush1.bf16.msra.mxu0 %v1214
        %1343 = vmatprep.mubr.bf16.mxu0 %v978
        %1344 = vmatmul.mubr.bf16.gmra.mrb[0].mxu0 %v977
        %v1345 = vpop.f32.mrb[0].mxu0
        %v1346 = vadd.f32 %v1282, %v1345
        %v1347 = vpop.f32.mrb[0].mxu0
        %v1348 = vpop.f32.mrb[0].mxu0
        %v1349 = vadd.f32 %v1285, %v1348
        %v1350 = vpop.f32.mrb[0].mxu0
        %1351 = vmatprep.mubr.bf16.mxu0 %v982
        %1352 = vmatmul.mubr.bf16.gmra.mrb[0].mxu0 %v981
        %v1353 = vpop.f32.mrb[0].mxu0
        %v1354 = vadd.f32 %v1290, %v1353
        %v1355 = vpop.f32.mrb[0].mxu0
        %v1356 = vpop.f32.mrb[0].mxu0
        %v1357 = vadd.f32 %v1293, %v1356
        %v1358 = vpop.f32.mrb[0].mxu0
        %1359 = vmatprep.mubr.bf16.mxu0 %v986
        %1360 = vmatmul.mubr.bf16.gmra.mrb[0].mxu0 %v985
        %v1361 = vpop.f32.mrb[0].mxu0
        %v1362 = vadd.f32 %v1298, %v1361
        %v1363 = vpop.f32.mrb[0].mxu0
        %v1364 = vpop.f32.mrb[0].mxu0
        %v1365 = vadd.f32 %v1301, %v1364
        %v1366 = vpop.f32.mrb[0].mxu0
        %1367 = vmatprep.mubr.bf16.mxu0 %v990
        %1368 = vmatmul.mubr.bf16.gmra.mrb[0].mxu0 %v989
        %v1369 = vpop.f32.mrb[0].mxu0
        %v1370 = vadd.f32 %v1306, %v1369
        %v1371 = vpop.f32.mrb[0].mxu0
        %v1372 = vpop.f32.mrb[0].mxu0
        %v1373 = vpop.f32.mrb[0].mxu0
        %1374 = vdwg.mxu0
        %v1375 = vadd.f32 %v469, %v1346
        %v1376 = vadd.f32 %v470, %v1349
        %v1377 = vadd.f32 %v471, %v1354
        %v1378 = vadd.f32 %v472, %v1357
        %v1379 = vadd.f32 %v473, %v1362
        %v1380 = vadd.f32 %v474, %v1365
        %v1381 = vadd.f32 %v475, %v1370
        %v1382 = vld [vmem:[%s7] sm:$0x1]
        %v1384 = vlaneseq
        %v1385 = vshrl.u32 %v1384, 7
        %v1386 = vsub.s32 0, %v1385
        %v1387 = vrot.slane %v1382, %v1386
        %v1389 = vadd.f32 %v1375, %v1387
        %v1390 = vadd.f32 %v1376, %v1387
        %v1391 = vadd.f32 %v1377, %v1387
        %v1392 = vadd.f32 %v1378, %v1387
        %v1393 = vadd.f32 %v1379, %v1387
        %v1394 = vadd.f32 %v1380, %v1387
        %v1395 = vadd.f32 %v1381, %v1387
        %1396 = vst [vmem:[%s352] sm:$0xff] %v1389
        %1397 = vst [vmem:[%s352 + $0x8] sm:$0xff] %v1390
        %1398 = vst [vmem:[%s352 + $0x10] sm:$0xff] %v1391
        %1399 = vst [vmem:[%s352 + $0x18] sm:$0xff] %v1392
        %1400 = vst [vmem:[%s352 + $0x20] sm:$0xff] %v1393
        %1401 = vst [vmem:[%s352 + $0x28] sm:$0xff] %v1394
        %1402 = vst [vmem:[%s352 + $0x30] sm:$0xff] %v1395
        %s1403 = sand.u32 %s207, 1
        %s1404 = scalar_lea.sflag [#allocation4], %s1403
        %s1405 = sand.u32 %s207, 1
        %s1406 = smul.addr %s1405, 56
        %s1407 = scalar_lea.vmem [#allocation8], %s1406
        // Predicated region
        $region65: #{tpu_custom_call.1} parent=51 // pred_check
          %p1408 = pneg %p217
        $region66: #{tpu_custom_call.1} parent=51 // pred_check_branch
          %1410 = sbr.rel (%p1408) target = $region68
        $region67: #{tpu_custom_call.1} parent=51 // pred_region
          %s1411 = smul.u32 7, %s26
          %s1413 = ssub.s32 896, 896
          %1414 = vsyncadd %s1404, %s1413
          %s1415 = smul.addr %s1411, 128
          %s1416 = scalar_lea.hbm %s8, %s1415
          %s1417 = sshll.u32 %s1407, 4
          %s1418 = int_to_ptr.vmem [resolvable:$true] %s1417
          %1423 = dma.vmem_to_hbm [thread:$0]  %s1418, 896, %s1416, %s1404, 128, 128, 8
        $region68: #{tpu_custom_call.1} parent=51 // pred_fallthru
          _
      $region52: #{tpu_custom_call.1} parent=5 // pred_fallthru
        _
      %p1424 = scmp.le.s32.totalorder 2, %s21
      // Predicated region
      $region69: #{tpu_custom_call.1} parent=5 // pred_check
        %p1425 = pneg %p1424
      $region70: #{tpu_custom_call.1} parent=5 // pred_check_branch
        %1427 = sbr.rel (%p1425) target = $region72
      $region71: #{tpu_custom_call.1} parent=5 // pred_region
        %s1428 = ssub.s32 %s21, 2
        // Predicated region
        $region73: #{tpu_custom_call.1} parent=71 // pred_check
          %p1429 = pneg %p223
        $region74: #{tpu_custom_call.1} parent=71 // pred_check_branch
          %1431 = sbr.rel (%p1429) target = $region76
        $region75: #{tpu_custom_call.1} parent=71 // pred_region
          %s1432 = sand.u32 %s208, 1
          %s1433 = scalar_lea.sflag [#allocation4], %s1432
          %s1434 = sand.u32 %s208, 1
          %s1435 = smul.addr %s1434, 56
          %s1436 = scalar_lea.vmem [#allocation8], %s1435
          %1437 = dma.done %s1433, 896
        $region76: #{tpu_custom_call.1} parent=71 // pred_fallthru
          _
      $region72: #{tpu_custom_call.1} parent=5 // pred_fallthru
        _
    $region6: #{tpu_custom_call.1} parent=1 // loop_footer
      %s25 = sadd.s32 1, %s21
    $region7: #{tpu_custom_call.1} parent=1 // loop_footer_branch
      %20 = sbr.rel target = $region3
    $region8: #{tpu_custom_call.1} parent=1 // loop_exit
      _
    %1438 = vsyncpa [#allocation3], 1
    %s1439 = scalar_lea.sflag [#allocation3], 1
    %1440 = vsyncpa %s1439, 1
    %1441 = vsyncpa [#allocation6], 1
    %1442 = vsyncpa [#allocation4], 1
    %s1443 = scalar_lea.sflag [#allocation4], 1
    %1444 = vsyncpa %s1443, 1

</llo_original>
